<compile_context>
chip_gen: v5e
topology: v5e:2x2
jax: 0.10.0
libtpu: 0.0.40
codegen_flags: <defaults>
</compile_context>

<pallas_src>
import jax
import jax.numpy as jnp
import numpy as np
from jax.experimental import pallas as pl
from jax.experimental.pallas import tpu as pltpu

T_PAD = 128     # symbolic terms padded to one full lane dimension
B_BLK = 32      # simulation steps per grid iteration (sublane axis)
N_FUNCS = 14
FUNCS = ['sin', 'cos', 'tan', 'csc', 'sec', 'cot', 'arcsin', 'arccos',
         'arctan', 'exp', 'log', 'poly1', 'poly2', 'poly3']

_PI = 3.141592653589793
_HALF_PI = 1.5707963267948966
_INV_PI = 0.3183098861837907

_SIN_C = (1.0, -1.0 / 6.0, 1.0 / 120.0, -1.0 / 5040.0,
          1.0 / 362880.0, -1.0 / 39916800.0, 1.0 / 6227020800.0)
_COS_C = (1.0, -0.5, 1.0 / 24.0, -1.0 / 720.0,
          1.0 / 40320.0, -1.0 / 3628800.0, 1.0 / 479001600.0)
_ASIN_C = (1.0, 1.0 / 6.0, 3.0 / 40.0, 15.0 / 336.0,
           105.0 / 3456.0, 945.0 / 42240.0, 10395.0 / 599040.0)
_ATAN_C = (1.0, -1.0 / 3.0, 1.0 / 5.0, -1.0 / 7.0,
           1.0 / 9.0, -1.0 / 11.0, 1.0 / 13.0)


# ---------------- in-kernel math helpers (vector, f32) ----------------

def _recip(x):
  # EUP vrcp seed + one Newton step -> full f32 accuracy, no VPU divide.
  # Guarded so x == 0 returns the seed (inf) instead of inf*NaN.
  r = pl.reciprocal(x, approx=True)
  y = r * (2.0 - x * r)
  return jnp.where(x == 0.0, r, y)


def _floor(y):
  # TODO(synk): int32-trunc floor; accurate for the demo's |z| range, not a
  # Payne-Hanek style reduction for huge |z|.
  t = y.astype(jnp.int32).astype(jnp.float32)
  return jnp.where(t > y, t - 1.0, t)


def _poly7(u, u2, u4, c):
  # c0 + c1 u + ... + c6 u^6, Estrin form with shared powers u2=u*u, u4=u2*u2.
  q0 = (c[0] + c[1] * u) + (c[2] + c[3] * u) * u2
  q1 = (c[4] + c[5] * u) + c[6] * u2
  return q0 + q1 * u4


def _sincos(z):
  # One shared range reduction: z = r + k*pi, |r| <= pi/2
  #   sin(z) = (-1)^k sin(r),   cos(z) = (-1)^k cos(r)
  k = _floor(z * _INV_PI + 0.5)
  r = z - k * _PI
  parity = k - 2.0 * _floor(k * 0.5)            # 0.0 or 1.0
  sign = 1.0 - 2.0 * parity
  r2 = r * r
  r4 = r2 * r2
  r8 = r4 * r4
  sin_z = sign * (r * _poly7(r2, r4, r8, _SIN_C))
  cos_z = sign * _poly7(r2, r4, r8, _COS_C)
  return sin_z, cos_z


def _atan(z):
  sgn = jnp.where(z < 0.0, -1.0, 1.0)
  a = jnp.abs(z)
  big = a > 1.0
  x = jnp.where(big, _recip(jnp.maximum(a, 1e-30)), a)       # x in [0, 1]
  t8 = 0.41421356237309503                                   # tan(pi/8)
  hi = x > t8
  t = jnp.where(hi, (x - 1.0) * _recip(x + 1.0), x)          # |t| <= tan(pi/8)
  t2 = t * t
  t4 = t2 * t2
  r = t * _poly7(t2, t4, t4 * t4, _ATAN_C)
  r = jnp.where(hi, _PI / 4.0 + r, r)
  r = jnp.where(big, _HALF_PI - r, r)
  return sgn * r


def _asin(x):
  sgn = jnp.where(x < 0.0, -1.0, 1.0)
  a = jnp.abs(x)
  big = a > 0.5
  # a > 0.5:  asin(a) = pi/2 - 2*asin(sqrt((1-a)/2)),  argument <= 0.5
  y = jnp.where(big, jnp.sqrt(jnp.maximum((1.0 - a) * 0.5, 0.0)), a)
  y2 = y * y
  y4 = y2 * y2
  r = y * _poly7(y2, y4, y4 * y4, _ASIN_C)
  return sgn * jnp.where(big, _HALF_PI - 2.0 * r, r)


# ---------------------------- the kernel ----------------------------

def series_kernel(scal_ref, xt_ref, params_ref, out_ref):
  B = xt_ref.shape[0]

  scal = scal_ref[...]                    # (1, 2): [scalar_w, scalar_b]
  sw = scal[0:1, 0:1]
  sb = scal[0:1, 1:2]

  xt = xt_ref[...]                        # (B, 2): [step/100, target]
  x_raw = xt[:, 0:1]
  target = xt[:, 1:2]

  # ScalarLayer (1x1 linear) + residual, then SymbolicTerm.safe_input clamp.
  x_sym = x_raw + (sw * x_raw + sb)
  xc = jnp.minimum(jnp.maximum(x_sym, 1e-6), 1e6)            # (B, 1)

  P = params_ref[...]                     # (8, T_PAD)
  a1 = P[0:1, :]
  b1 = P[1:2, :]
  c1 = P[2:3, :]
  w1 = P[3:4, :]
  f1 = P[7:8, :]                          # func-type index (padded lanes = -1)

  # Hoist the heavily reused sublane/lane broadcasts once (steps x terms).
  a = jnp.broadcast_to(a1, (B, T_PAD))
  xcb = jnp.broadcast_to(xc, (B, T_PAD))

  z = b1 * xcb + c1                       # (B, T_PAD)

  # ---- function select: compute -> mask -> accumulate (low vreg live set)
  sin_z, cos_z = _sincos(z)               # shared range reduction
  rsin = _recip(sin_z)                    # EUP reciprocals instead of divides
  rcos = _recip(cos_z)
  v = jnp.where(f1 == 0.0, a * sin_z, 0.0)                       # sin
  v = v + jnp.where(f1 == 1.0, a * cos_z, 0.0)                   # cos
  v = v + jnp.where(f1 == 2.0, a * (sin_z * rcos), 0.0)          # tan
  v = v + jnp.where(f1 == 3.0, a * rsin, 0.0)                    # csc
  v = v + jnp.where(f1 == 4.0, a * rcos, 0.0)                    # sec
  v = v + jnp.where(f1 == 5.0, a * (cos_z * rsin), 0.0)          # cot

  z_unit = jnp.minimum(jnp.maximum(z, -1.0 + 0.001), 1.0 - 0.001)
  asin_z = _asin(z_unit)
  v = v + jnp.where(f1 == 6.0, a * asin_z, 0.0)                  # arcsin
  v = v + jnp.where(f1 == 7.0, a * (_HALF_PI - asin_z), 0.0)     # arccos
  v = v + jnp.where(f1 == 8.0, a * _atan(z), 0.0)                # arctan
  v = v + jnp.where(f1 == 9.0,
                    a * jnp.exp(jnp.minimum(z, 10.0)), 0.0)      # exp
  v = v + jnp.where(f1 == 10.0,
                    a * jnp.log(jnp.maximum(z, 0.001)), 0.0)     # log

  p1 = a * xcb + b1
  q = p1 * xcb
  v = v + jnp.where(f1 == 11.0, p1, 0.0)                         # poly1
  v = v + jnp.where(f1 == 12.0, q + c1, 0.0)                     # poly2
  v = v + jnp.where(f1 == 13.0, q * xcb + c1, 0.0)               # poly3

  # ---- per-term routing softmax at (1, T_PAD); padded lanes carry
  #      route2 = -1e30, so their side weight is exactly 0.
  r0 = P[4:5, :]
  r1 = P[5:6, :]
  r2 = P[6:7, :]
  mx = jnp.maximum(jnp.maximum(r0, r1), r2)
  E = jnp.exp(P[4:7, :] - mx)             # one EUP pass over the 3 logit rows
  e0 = E[0:1, :]
  e1 = E[1:2, :]
  e2 = E[2:3, :]
  inv = _recip(e0 + e1 + e2)
  g = (e0 - e1) * inv * w1                # (rw0 - rw1) * weight
  rw2 = e2 * inv

  # neighbor value: value[:, i+1] via an XLU lane rotate.  Lane 127 wraps to
  # value[:, 0] but its rw2 is exactly 0 (padded), so no mask is needed.
  v_next = pltpu.roll(v, shift=T_PAD - 1, axis=1)

  contrib = g * v + rw2 * v_next          # fwd + bwd + side per term
  total = jnp.sum(contrib, axis=1, keepdims=True)              # (B, 1)

  # smooth_l1_loss(total, target), beta = 1, per step
  diff = total - target
  absd = jnp.abs(diff)
  loss = jnp.where(absd < 1.0, 0.5 * diff * diff, absd - 0.5)

  out_ref[:, 0:1] = total
  out_ref[:, 1:2] = loss


# ---------------------------- host wrapper ----------------------------

def _forward_impl(steps, sw, sb, a, b, c, w, route, func_idx, phase):
  """Simulates len(steps) consecutive forward(step) calls in one launch.

  Steps live on the sublane axis (B_BLK per grid iteration), symbolic terms
  live on the 128-lane axis.
  """
  num_terms = a.shape[0]
  n = steps.shape[0]
  assert 0 < num_terms < T_PAD
  n_pad = ((n + B_BLK - 1) // B_BLK) * B_BLK

  xs = steps.astype(jnp.float32) / 100.0
  # GoalGenerator.update_goal: phase += 0.1 per forward; target = sin(phase)
  phases = phase + 0.1 * jnp.arange(1, n + 1, dtype=jnp.float32)
  targets = jnp.sin(phases)
  xt = jnp.stack([xs, targets], axis=1)                        # (n, 2)
  xt = jnp.pad(xt, ((0, n_pad - n), (0, 0)))

  # params slab rows: [a, b, c, weight, route0, route1, route2, func_idx]
  rows = jnp.stack([a, b, c, w, route[:, 0], route[:, 1], route[:, 2],
                    func_idx.astype(jnp.float32)], axis=0)     # (8, num_terms)
  # padded lanes: a=b=w=0, c=1 (keeps z away from 0), route2=-1e30 (side
  # weight exactly 0 under softmax), func_idx=-1 (selects no function).
  pad_col = jnp.array([0., 0., 1., 0., 0., 0., -1e30, -1.],
                      jnp.float32)[:, None]
  params = jnp.concatenate(
      [rows, jnp.broadcast_to(pad_col, (8, T_PAD - num_terms))], axis=1)

  scalars = jnp.stack([sw, sb]).astype(jnp.float32).reshape(1, 2)

  out = pl.pallas_call(
      series_kernel,
      out_shape=jax.ShapeDtypeStruct((n_pad, 2), jnp.float32),
      grid=(n_pad // B_BLK,),
      in_specs=[
          pl.BlockSpec((1, 2), lambda i: (0, 0)),          # [sw, sb], resident
          pl.BlockSpec((B_BLK, 2), lambda i: (i, 0)),      # per-step x, target
          pl.BlockSpec((8, T_PAD), lambda i: (0, 0)),      # params, resident
      ],
      out_specs=pl.BlockSpec((B_BLK, 2), lambda i: (i, 0)),
      compiler_params=pltpu.CompilerParams(
          dimension_semantics=("parallel",)),              # v7x: 2 TCs split it
  )(scalars, xt, params)

  return out[:n, 0], targets, out[:n, 1]


series_simulator_forward = jax.jit(_forward_impl)


# ---------------------------- pure-JAX reference ----------------------------

def reference_forward_batch(steps, sw, sb, a, b, c, w, route, func_idx,
                            phase0=0.0):
  """Pure-JAX reference for len(steps) sequential forward(step) calls."""
  n = steps.shape[0]
  x = steps.astype(jnp.float32) / 100.0
  x_sym = x + (sw * x + sb)
  xc = jnp.clip(x_sym, 1e-6, 1e6)[:, None]                     # (n, 1)
  targets = jnp.sin(phase0 + 0.1 * jnp.arange(1, n + 1, dtype=jnp.float32))

  z = b[None, :] * xc + c[None, :]                             # (n, nt)
  zu = jnp.clip(z, -1.0 + 0.001, 1.0 - 0.001)
  cands = [
      a * jnp.sin(z), a * jnp.cos(z), a * jnp.tan(z),
      a / jnp.sin(z), a / jnp.cos(z), a / jnp.tan(z),
      a * jnp.arcsin(zu), a * jnp.arccos(zu), a * jnp.arctan(z),
      a * jnp.exp(jnp.minimum(z, 10.0)),
      a * jnp.log(jnp.maximum(z, 0.001)),
      a * xc + b, a * xc ** 2 + b * xc + c, a * xc ** 3 + b * xc ** 2 + c,
  ]
  value = jnp.zeros_like(z)
  for f in range(N_FUNCS):
    value = value + jnp.where(func_idx[None, :] == f, cands[f], 0.0)

  rw = jax.nn.softmax(route, axis=-1)                          # (nt, 3)
  own = (rw[:, 0] - rw[:, 1]) * w * value                      # fwd + bwd
  side = rw[:-1, 2] * value[:, 1:]                             # neighbor term
  total = own.sum(axis=1) + side.sum(axis=1)
  diff = total - targets
  loss = jnp.where(jnp.abs(diff) < 1.0, 0.5 * diff * diff, jnp.abs(diff) - 0.5)
  return total, targets, loss


# ---------------------------- main ----------------------------

if __name__ == "__main__":
  NUM_TERMS = 14
  key = jax.random.PRNGKey(0)
  k = jax.random.split(key, 7)

  # ScalarLayer (nn.Linear(1,1)) parameters
  sw = jax.random.uniform(k[0], (), jnp.float32, -1.0, 1.0)
  sb = jax.random.uniform(k[1], (), jnp.float32, -1.0, 1.0)

  # SymbolicTerm parameters (torch.randn equivalents)
  a = jax.random.normal(k[2], (NUM_TERMS,), jnp.float32)
  b = jax.random.normal(k[3], (NUM_TERMS,), jnp.float32)
  c = jax.random.normal(k[4], (NUM_TERMS,), jnp.float32)
  w = jax.random.normal(k[5], (NUM_TERMS,), jnp.float32)
  route = jax.random.normal(k[6], (NUM_TERMS, 3), jnp.float32)

  # deterministic stand-in for random.choice(funcs): every func type once
  func_ids = [i % N_FUNCS for i in range(NUM_TERMS)]

  # 128 consecutive forward(step) calls, batched into one kernel launch
  # (4 grid blocks of 32 steps each).
  steps = jnp.arange(128, dtype=jnp.float32)

  totals, targets, losses = series_simulator_forward(
      steps, sw, sb, a, b, c, w, route,
      jnp.asarray(func_ids, jnp.float32), 0.0)
  jax.block_until_ready((totals, targets, losses))

  ref_total, ref_target, ref_loss = reference_forward_batch(
      steps, sw, sb, a, b, c, w, route,
      jnp.asarray(func_ids, jnp.int32), 0.0)

  np.testing.assert_allclose(np.asarray(targets), np.asarray(ref_target),
                             rtol=1e-5, atol=1e-5)
  np.testing.assert_allclose(np.asarray(totals), np.asarray(ref_total),
                             rtol=3e-3, atol=3e-3)
  np.testing.assert_allclose(np.asarray(losses), np.asarray(ref_loss),
                             rtol=3e-3, atol=3e-3)

  print("KERNEL_OK")
</pallas_src>

<mosaic_0001>
module attributes {stable_mosaic.version = 11 : i64} {
  func.func @series_kernel(%arg0: i32, %arg1: memref<1x2xf32, #tpu.memory_space<vmem>>, %arg2: memref<32x2xf32, #tpu.memory_space<vmem>>, %arg3: memref<8x128xf32, #tpu.memory_space<vmem>>, %arg4: memref<32x2xf32, #tpu.memory_space<vmem>>) attributes {dimension_semantics = [#tpu.dimension_semantics<parallel>], iteration_bounds = array<i64: 4>, scalar_prefetch = 0 : i64, scratch_operands = 0 : i64, tpu.core_type = #tpu.core_type<tc>, window_params = [{pipeline_mode = #tpu.pipeline_mode<synchronous>, transform_indices = @transform_0, window_bounds = array<i64: 1, 2>}, {transform_indices = @transform_1, window_bounds = array<i64: 32, 2>}, {pipeline_mode = #tpu.pipeline_mode<synchronous>, transform_indices = @transform_2, window_bounds = array<i64: 8, 128>}, {transform_indices = @transform_3, window_bounds = array<i64: 32, 2>}]} {
    %c0 = arith.constant 0 : index
    %c0_0 = arith.constant 0 : index
    %0 = vector.load %arg1[%c0, %c0_0] : memref<1x2xf32, #tpu.memory_space<vmem>>, vector<1x2xf32>
    %1 = vector.extract_strided_slice %0 {offsets = [0, 0], sizes = [1, 1], strides = [1, 1]} : vector<1x2xf32> to vector<1x1xf32>
    %2 = vector.extract_strided_slice %0 {offsets = [0, 1], sizes = [1, 1], strides = [1, 1]} : vector<1x2xf32> to vector<1x1xf32>
    %c0_1 = arith.constant 0 : index
    %c0_2 = arith.constant 0 : index
    %3 = vector.load %arg2[%c0_1, %c0_2] : memref<32x2xf32, #tpu.memory_space<vmem>>, vector<32x2xf32>
    %4 = vector.extract_strided_slice %3 {offsets = [0, 0], sizes = [32, 1], strides = [1, 1]} : vector<32x2xf32> to vector<32x1xf32>
    %5 = vector.extract_strided_slice %3 {offsets = [0, 1], sizes = [32, 1], strides = [1, 1]} : vector<32x2xf32> to vector<32x1xf32>
    %6 = vector.broadcast %1 : vector<1x1xf32> to vector<32x1xf32>
    %7 = arith.mulf %6, %4 : vector<32x1xf32>
    %8 = vector.broadcast %2 : vector<1x1xf32> to vector<32x1xf32>
    %9 = arith.addf %7, %8 : vector<32x1xf32>
    %10 = arith.addf %4, %9 : vector<32x1xf32>
    %cst = arith.constant 9.99999997E-7 : f32
    %11 = vector.broadcast %cst : f32 to vector<32x1xf32>
    %12 = arith.maximumf %10, %11 : vector<32x1xf32>
    %cst_3 = arith.constant 1.000000e+06 : f32
    %13 = vector.broadcast %cst_3 : f32 to vector<32x1xf32>
    %14 = arith.minimumf %12, %13 : vector<32x1xf32>
    %c0_4 = arith.constant 0 : index
    %c0_5 = arith.constant 0 : index
    %15 = vector.load %arg3[%c0_4, %c0_5] : memref<8x128xf32, #tpu.memory_space<vmem>>, vector<8x128xf32>
    %16 = vector.extract_strided_slice %15 {offsets = [0, 0], sizes = [1, 128], strides = [1, 1]} : vector<8x128xf32> to vector<1x128xf32>
    %17 = vector.extract_strided_slice %15 {offsets = [1, 0], sizes = [1, 128], strides = [1, 1]} : vector<8x128xf32> to vector<1x128xf32>
    %18 = vector.extract_strided_slice %15 {offsets = [2, 0], sizes = [1, 128], strides = [1, 1]} : vector<8x128xf32> to vector<1x128xf32>
    %19 = vector.extract_strided_slice %15 {offsets = [3, 0], sizes = [1, 128], strides = [1, 1]} : vector<8x128xf32> to vector<1x128xf32>
    %20 = vector.extract_strided_slice %15 {offsets = [7, 0], sizes = [1, 128], strides = [1, 1]} : vector<8x128xf32> to vector<1x128xf32>
    %21 = vector.shape_cast %16 : vector<1x128xf32> to vector<1x128xf32>
    %22 = vector.broadcast %21 : vector<1x128xf32> to vector<32x128xf32>
    %23 = vector.shape_cast %14 : vector<32x1xf32> to vector<32x1xf32>
    %24 = vector.broadcast %23 : vector<32x1xf32> to vector<32x128xf32>
    %25 = vector.broadcast %17 : vector<1x128xf32> to vector<32x128xf32>
    %26 = arith.mulf %25, %24 : vector<32x128xf32>
    %27 = vector.broadcast %18 : vector<1x128xf32> to vector<32x128xf32>
    %28 = arith.addf %26, %27 : vector<32x128xf32>
    %cst_6 = arith.constant 0.318309873 : f32
    %29 = vector.broadcast %cst_6 : f32 to vector<32x128xf32>
    %30 = arith.mulf %28, %29 : vector<32x128xf32>
    %cst_7 = arith.constant 5.000000e-01 : f32
    %31 = vector.broadcast %cst_7 : f32 to vector<32x128xf32>
    %32 = arith.addf %30, %31 : vector<32x128xf32>
    %33 = arith.fptosi %32 : vector<32x128xf32> to vector<32x128xi32>
    %34 = arith.sitofp %33 : vector<32x128xi32> to vector<32x128xf32>
    %35 = arith.cmpf ogt, %34, %32 : vector<32x128xf32>
    %cst_8 = arith.constant 1.000000e+00 : f32
    %36 = vector.broadcast %cst_8 : f32 to vector<32x128xf32>
    %37 = arith.subf %34, %36 : vector<32x128xf32>
    %38 = arith.select %35, %37, %34 : vector<32x128xi1>, vector<32x128xf32>
    %cst_9 = arith.constant 3.14159274 : f32
    %39 = vector.broadcast %cst_9 : f32 to vector<32x128xf32>
    %40 = arith.mulf %38, %39 : vector<32x128xf32>
    %41 = arith.subf %28, %40 : vector<32x128xf32>
    %cst_10 = arith.constant 5.000000e-01 : f32
    %42 = vector.broadcast %cst_10 : f32 to vector<32x128xf32>
    %43 = arith.mulf %38, %42 : vector<32x128xf32>
    %44 = arith.fptosi %43 : vector<32x128xf32> to vector<32x128xi32>
    %45 = arith.sitofp %44 : vector<32x128xi32> to vector<32x128xf32>
    %46 = arith.cmpf ogt, %45, %43 : vector<32x128xf32>
    %cst_11 = arith.constant 1.000000e+00 : f32
    %47 = vector.broadcast %cst_11 : f32 to vector<32x128xf32>
    %48 = arith.subf %45, %47 : vector<32x128xf32>
    %49 = arith.select %46, %48, %45 : vector<32x128xi1>, vector<32x128xf32>
    %cst_12 = arith.constant 2.000000e+00 : f32
    %50 = vector.broadcast %cst_12 : f32 to vector<32x128xf32>
    %51 = arith.mulf %50, %49 : vector<32x128xf32>
    %52 = arith.subf %38, %51 : vector<32x128xf32>
    %cst_13 = arith.constant 2.000000e+00 : f32
    %53 = vector.broadcast %cst_13 : f32 to vector<32x128xf32>
    %54 = arith.mulf %53, %52 : vector<32x128xf32>
    %cst_14 = arith.constant 1.000000e+00 : f32
    %55 = vector.broadcast %cst_14 : f32 to vector<32x128xf32>
    %56 = arith.subf %55, %54 : vector<32x128xf32>
    %57 = arith.mulf %41, %41 : vector<32x128xf32>
    %58 = arith.mulf %57, %57 : vector<32x128xf32>
    %59 = arith.mulf %58, %58 : vector<32x128xf32>
    %cst_15 = arith.constant -0.166666672 : f32
    %60 = vector.broadcast %cst_15 : f32 to vector<32x128xf32>
    %61 = arith.mulf %60, %57 : vector<32x128xf32>
    %cst_16 = arith.constant 1.000000e+00 : f32
    %62 = vector.broadcast %cst_16 : f32 to vector<32x128xf32>
    %63 = arith.addf %62, %61 : vector<32x128xf32>
    %cst_17 = arith.constant -1.98412701E-4 : f32
    %64 = vector.broadcast %cst_17 : f32 to vector<32x128xf32>
    %65 = arith.mulf %64, %57 : vector<32x128xf32>
    %cst_18 = arith.constant 0.00833333377 : f32
    %66 = vector.broadcast %cst_18 : f32 to vector<32x128xf32>
    %67 = arith.addf %66, %65 : vector<32x128xf32>
    %68 = arith.mulf %67, %58 : vector<32x128xf32>
    %69 = arith.addf %63, %68 : vector<32x128xf32>
    %cst_19 = arith.constant -2.50521079E-8 : f32
    %70 = vector.broadcast %cst_19 : f32 to vector<32x128xf32>
    %71 = arith.mulf %70, %57 : vector<32x128xf32>
    %cst_20 = arith.constant 2.75573188E-6 : f32
    %72 = vector.broadcast %cst_20 : f32 to vector<32x128xf32>
    %73 = arith.addf %72, %71 : vector<32x128xf32>
    %cst_21 = arith.constant 1.60590444E-10 : f32
    %74 = vector.broadcast %cst_21 : f32 to vector<32x128xf32>
    %75 = arith.mulf %74, %58 : vector<32x128xf32>
    %76 = arith.addf %73, %75 : vector<32x128xf32>
    %77 = arith.mulf %76, %59 : vector<32x128xf32>
    %78 = arith.addf %69, %77 : vector<32x128xf32>
    %79 = arith.mulf %41, %78 : vector<32x128xf32>
    %80 = arith.mulf %56, %79 : vector<32x128xf32>
    %cst_22 = arith.constant -5.000000e-01 : f32
    %81 = vector.broadcast %cst_22 : f32 to vector<32x128xf32>
    %82 = arith.mulf %81, %57 : vector<32x128xf32>
    %cst_23 = arith.constant 1.000000e+00 : f32
    %83 = vector.broadcast %cst_23 : f32 to vector<32x128xf32>
    %84 = arith.addf %83, %82 : vector<32x128xf32>
    %cst_24 = arith.constant -0.00138888892 : f32
    %85 = vector.broadcast %cst_24 : f32 to vector<32x128xf32>
    %86 = arith.mulf %85, %57 : vector<32x128xf32>
    %cst_25 = arith.constant 0.0416666679 : f32
    %87 = vector.broadcast %cst_25 : f32 to vector<32x128xf32>
    %88 = arith.addf %87, %86 : vector<32x128xf32>
    %89 = arith.mulf %88, %58 : vector<32x128xf32>
    %90 = arith.addf %84, %89 : vector<32x128xf32>
    %cst_26 = arith.constant -2.755732E-7 : f32
    %91 = vector.broadcast %cst_26 : f32 to vector<32x128xf32>
    %92 = arith.mulf %91, %57 : vector<32x128xf32>
    %cst_27 = arith.constant 2.48015876E-5 : f32
    %93 = vector.broadcast %cst_27 : f32 to vector<32x128xf32>
    %94 = arith.addf %93, %92 : vector<32x128xf32>
    %cst_28 = arith.constant 2.08767559E-9 : f32
    %95 = vector.broadcast %cst_28 : f32 to vector<32x128xf32>
    %96 = arith.mulf %95, %58 : vector<32x128xf32>
    %97 = arith.addf %94, %96 : vector<32x128xf32>
    %98 = arith.mulf %97, %59 : vector<32x128xf32>
    %99 = arith.addf %90, %98 : vector<32x128xf32>
    %100 = arith.mulf %56, %99 : vector<32x128xf32>
    %101 = tpu.reciprocal %80 {approx = true} : vector<32x128xf32> -> vector<32x128xf32>
    %102 = arith.mulf %80, %101 : vector<32x128xf32>
    %cst_29 = arith.constant 2.000000e+00 : f32
    %103 = vector.broadcast %cst_29 : f32 to vector<32x128xf32>
    %104 = arith.subf %103, %102 : vector<32x128xf32>
    %105 = arith.mulf %101, %104 : vector<32x128xf32>
    %cst_30 = arith.constant 0.000000e+00 : f32
    %106 = vector.broadcast %cst_30 : f32 to vector<32x128xf32>
    %107 = arith.cmpf oeq, %80, %106 : vector<32x128xf32>
    %108 = arith.select %107, %101, %105 : vector<32x128xi1>, vector<32x128xf32>
    %109 = tpu.reciprocal %100 {approx = true} : vector<32x128xf32> -> vector<32x128xf32>
    %110 = arith.mulf %100, %109 : vector<32x128xf32>
    %cst_31 = arith.constant 2.000000e+00 : f32
    %111 = vector.broadcast %cst_31 : f32 to vector<32x128xf32>
    %112 = arith.subf %111, %110 : vector<32x128xf32>
    %113 = arith.mulf %109, %112 : vector<32x128xf32>
    %cst_32 = arith.constant 0.000000e+00 : f32
    %114 = vector.broadcast %cst_32 : f32 to vector<32x128xf32>
    %115 = arith.cmpf oeq, %100, %114 : vector<32x128xf32>
    %116 = arith.select %115, %109, %113 : vector<32x128xi1>, vector<32x128xf32>
    %cst_33 = arith.constant 0.000000e+00 : f32
    %117 = vector.broadcast %cst_33 : f32 to vector<1x128xf32>
    %118 = arith.cmpf oeq, %20, %117 : vector<1x128xf32>
    %119 = arith.mulf %22, %80 : vector<32x128xf32>
    %cst_34 = arith.constant 0.000000e+00 : f32
    %120 = vector.shape_cast %118 : vector<1x128xi1> to vector<1x128xi1>
    %121 = vector.broadcast %120 : vector<1x128xi1> to vector<32x128xi1>
    %122 = vector.broadcast %cst_34 : f32 to vector<32x128xf32>
    %123 = arith.select %121, %119, %122 : vector<32x128xi1>, vector<32x128xf32>
    %cst_35 = arith.constant 1.000000e+00 : f32
    %124 = vector.broadcast %cst_35 : f32 to vector<1x128xf32>
    %125 = arith.cmpf oeq, %20, %124 : vector<1x128xf32>
    %126 = arith.mulf %22, %100 : vector<32x128xf32>
    %cst_36 = arith.constant 0.000000e+00 : f32
    %127 = vector.shape_cast %125 : vector<1x128xi1> to vector<1x128xi1>
    %128 = vector.broadcast %127 : vector<1x128xi1> to vector<32x128xi1>
    %129 = vector.broadcast %cst_36 : f32 to vector<32x128xf32>
    %130 = arith.select %128, %126, %129 : vector<32x128xi1>, vector<32x128xf32>
    %131 = arith.addf %123, %130 : vector<32x128xf32>
    %cst_37 = arith.constant 2.000000e+00 : f32
    %132 = vector.broadcast %cst_37 : f32 to vector<1x128xf32>
    %133 = arith.cmpf oeq, %20, %132 : vector<1x128xf32>
    %134 = arith.mulf %80, %116 : vector<32x128xf32>
    %135 = arith.mulf %22, %134 : vector<32x128xf32>
    %cst_38 = arith.constant 0.000000e+00 : f32
    %136 = vector.shape_cast %133 : vector<1x128xi1> to vector<1x128xi1>
    %137 = vector.broadcast %136 : vector<1x128xi1> to vector<32x128xi1>
    %138 = vector.broadcast %cst_38 : f32 to vector<32x128xf32>
    %139 = arith.select %137, %135, %138 : vector<32x128xi1>, vector<32x128xf32>
    %140 = arith.addf %131, %139 : vector<32x128xf32>
    %cst_39 = arith.constant 3.000000e+00 : f32
    %141 = vector.broadcast %cst_39 : f32 to vector<1x128xf32>
    %142 = arith.cmpf oeq, %20, %141 : vector<1x128xf32>
    %143 = arith.mulf %22, %108 : vector<32x128xf32>
    %cst_40 = arith.constant 0.000000e+00 : f32
    %144 = vector.shape_cast %142 : vector<1x128xi1> to vector<1x128xi1>
    %145 = vector.broadcast %144 : vector<1x128xi1> to vector<32x128xi1>
    %146 = vector.broadcast %cst_40 : f32 to vector<32x128xf32>
    %147 = arith.select %145, %143, %146 : vector<32x128xi1>, vector<32x128xf32>
    %148 = arith.addf %140, %147 : vector<32x128xf32>
    %cst_41 = arith.constant 4.000000e+00 : f32
    %149 = vector.broadcast %cst_41 : f32 to vector<1x128xf32>
    %150 = arith.cmpf oeq, %20, %149 : vector<1x128xf32>
    %151 = arith.mulf %22, %116 : vector<32x128xf32>
    %cst_42 = arith.constant 0.000000e+00 : f32
    %152 = vector.shape_cast %150 : vector<1x128xi1> to vector<1x128xi1>
    %153 = vector.broadcast %152 : vector<1x128xi1> to vector<32x128xi1>
    %154 = vector.broadcast %cst_42 : f32 to vector<32x128xf32>
    %155 = arith.select %153, %151, %154 : vector<32x128xi1>, vector<32x128xf32>
    %156 = arith.addf %148, %155 : vector<32x128xf32>
    %cst_43 = arith.constant 5.000000e+00 : f32
    %157 = vector.broadcast %cst_43 : f32 to vector<1x128xf32>
    %158 = arith.cmpf oeq, %20, %157 : vector<1x128xf32>
    %159 = arith.mulf %100, %108 : vector<32x128xf32>
    %160 = arith.mulf %22, %159 : vector<32x128xf32>
    %cst_44 = arith.constant 0.000000e+00 : f32
    %161 = vector.shape_cast %158 : vector<1x128xi1> to vector<1x128xi1>
    %162 = vector.broadcast %161 : vector<1x128xi1> to vector<32x128xi1>
    %163 = vector.broadcast %cst_44 : f32 to vector<32x128xf32>
    %164 = arith.select %162, %160, %163 : vector<32x128xi1>, vector<32x128xf32>
    %165 = arith.addf %156, %164 : vector<32x128xf32>
    %cst_45 = arith.constant -9.990000e-01 : f32
    %166 = vector.broadcast %cst_45 : f32 to vector<32x128xf32>
    %167 = arith.maximumf %28, %166 : vector<32x128xf32>
    %cst_46 = arith.constant 9.990000e-01 : f32
    %168 = vector.broadcast %cst_46 : f32 to vector<32x128xf32>
    %169 = arith.minimumf %167, %168 : vector<32x128xf32>
    %cst_47 = arith.constant 0.000000e+00 : f32
    %170 = vector.broadcast %cst_47 : f32 to vector<32x128xf32>
    %171 = arith.cmpf olt, %169, %170 : vector<32x128xf32>
    %cst_48 = arith.constant -1.000000e+00 : f32
    %cst_49 = arith.constant 1.000000e+00 : f32
    %172 = vector.broadcast %cst_48 : f32 to vector<32x128xf32>
    %173 = vector.broadcast %cst_49 : f32 to vector<32x128xf32>
    %174 = arith.select %171, %172, %173 : vector<32x128xi1>, vector<32x128xf32>
    %175 = math.absf %169 : vector<32x128xf32>
    %cst_50 = arith.constant 5.000000e-01 : f32
    %176 = vector.broadcast %cst_50 : f32 to vector<32x128xf32>
    %177 = arith.cmpf ogt, %175, %176 : vector<32x128xf32>
    %cst_51 = arith.constant 1.000000e+00 : f32
    %178 = vector.broadcast %cst_51 : f32 to vector<32x128xf32>
    %179 = arith.subf %178, %175 : vector<32x128xf32>
    %cst_52 = arith.constant 5.000000e-01 : f32
    %180 = vector.broadcast %cst_52 : f32 to vector<32x128xf32>
    %181 = arith.mulf %179, %180 : vector<32x128xf32>
    %cst_53 = arith.constant 0.000000e+00 : f32
    %182 = vector.broadcast %cst_53 : f32 to vector<32x128xf32>
    %183 = arith.maximumf %181, %182 : vector<32x128xf32>
    %184 = math.sqrt %183 : vector<32x128xf32>
    %185 = arith.select %177, %184, %175 : vector<32x128xi1>, vector<32x128xf32>
    %186 = arith.mulf %185, %185 : vector<32x128xf32>
    %187 = arith.mulf %186, %186 : vector<32x128xf32>
    %188 = arith.mulf %187, %187 : vector<32x128xf32>
    %cst_54 = arith.constant 0.166666672 : f32
    %189 = vector.broadcast %cst_54 : f32 to vector<32x128xf32>
    %190 = arith.mulf %189, %186 : vector<32x128xf32>
    %cst_55 = arith.constant 1.000000e+00 : f32
    %191 = vector.broadcast %cst_55 : f32 to vector<32x128xf32>
    %192 = arith.addf %191, %190 : vector<32x128xf32>
    %cst_56 = arith.constant 0.0446428582 : f32
    %193 = vector.broadcast %cst_56 : f32 to vector<32x128xf32>
    %194 = arith.mulf %193, %186 : vector<32x128xf32>
    %cst_57 = arith.constant 7.500000e-02 : f32
    %195 = vector.broadcast %cst_57 : f32 to vector<32x128xf32>
    %196 = arith.addf %195, %194 : vector<32x128xf32>
    %197 = arith.mulf %196, %187 : vector<32x128xf32>
    %198 = arith.addf %192, %197 : vector<32x128xf32>
    %cst_58 = arith.constant 0.0223721582 : f32
    %199 = vector.broadcast %cst_58 : f32 to vector<32x128xf32>
    %200 = arith.mulf %199, %186 : vector<32x128xf32>
    %cst_59 = arith.constant 0.030381944 : f32
    %201 = vector.broadcast %cst_59 : f32 to vector<32x128xf32>
    %202 = arith.addf %201, %200 : vector<32x128xf32>
    %cst_60 = arith.constant 0.0173527636 : f32
    %203 = vector.broadcast %cst_60 : f32 to vector<32x128xf32>
    %204 = arith.mulf %203, %187 : vector<32x128xf32>
    %205 = arith.addf %202, %204 : vector<32x128xf32>
    %206 = arith.mulf %205, %188 : vector<32x128xf32>
    %207 = arith.addf %198, %206 : vector<32x128xf32>
    %208 = arith.mulf %185, %207 : vector<32x128xf32>
    %cst_61 = arith.constant 2.000000e+00 : f32
    %209 = vector.broadcast %cst_61 : f32 to vector<32x128xf32>
    %210 = arith.mulf %209, %208 : vector<32x128xf32>
    %cst_62 = arith.constant 1.57079637 : f32
    %211 = vector.broadcast %cst_62 : f32 to vector<32x128xf32>
    %212 = arith.subf %211, %210 : vector<32x128xf32>
    %213 = arith.select %177, %212, %208 : vector<32x128xi1>, vector<32x128xf32>
    %214 = arith.mulf %174, %213 : vector<32x128xf32>
    %cst_63 = arith.constant 6.000000e+00 : f32
    %215 = vector.broadcast %cst_63 : f32 to vector<1x128xf32>
    %216 = arith.cmpf oeq, %20, %215 : vector<1x128xf32>
    %217 = arith.mulf %22, %214 : vector<32x128xf32>
    %cst_64 = arith.constant 0.000000e+00 : f32
    %218 = vector.shape_cast %216 : vector<1x128xi1> to vector<1x128xi1>
    %219 = vector.broadcast %218 : vector<1x128xi1> to vector<32x128xi1>
    %220 = vector.broadcast %cst_64 : f32 to vector<32x128xf32>
    %221 = arith.select %219, %217, %220 : vector<32x128xi1>, vector<32x128xf32>
    %222 = arith.addf %165, %221 : vector<32x128xf32>
    %cst_65 = arith.constant 7.000000e+00 : f32
    %223 = vector.broadcast %cst_65 : f32 to vector<1x128xf32>
    %224 = arith.cmpf oeq, %20, %223 : vector<1x128xf32>
    %cst_66 = arith.constant 1.57079637 : f32
    %225 = vector.broadcast %cst_66 : f32 to vector<32x128xf32>
    %226 = arith.subf %225, %214 : vector<32x128xf32>
    %227 = arith.mulf %22, %226 : vector<32x128xf32>
    %cst_67 = arith.constant 0.000000e+00 : f32
    %228 = vector.shape_cast %224 : vector<1x128xi1> to vector<1x128xi1>
    %229 = vector.broadcast %228 : vector<1x128xi1> to vector<32x128xi1>
    %230 = vector.broadcast %cst_67 : f32 to vector<32x128xf32>
    %231 = arith.select %229, %227, %230 : vector<32x128xi1>, vector<32x128xf32>
    %232 = arith.addf %222, %231 : vector<32x128xf32>
    %cst_68 = arith.constant 8.000000e+00 : f32
    %233 = vector.broadcast %cst_68 : f32 to vector<1x128xf32>
    %234 = arith.cmpf oeq, %20, %233 : vector<1x128xf32>
    %cst_69 = arith.constant 0.000000e+00 : f32
    %235 = vector.broadcast %cst_69 : f32 to vector<32x128xf32>
    %236 = arith.cmpf olt, %28, %235 : vector<32x128xf32>
    %cst_70 = arith.constant -1.000000e+00 : f32
    %cst_71 = arith.constant 1.000000e+00 : f32
    %237 = vector.broadcast %cst_70 : f32 to vector<32x128xf32>
    %238 = vector.broadcast %cst_71 : f32 to vector<32x128xf32>
    %239 = arith.select %236, %237, %238 : vector<32x128xi1>, vector<32x128xf32>
    %240 = math.absf %28 : vector<32x128xf32>
    %cst_72 = arith.constant 1.000000e+00 : f32
    %241 = vector.broadcast %cst_72 : f32 to vector<32x128xf32>
    %242 = arith.cmpf ogt, %240, %241 : vector<32x128xf32>
    %cst_73 = arith.constant 1.000000e-30 : f32
    %243 = vector.broadcast %cst_73 : f32 to vector<32x128xf32>
    %244 = arith.maximumf %240, %243 : vector<32x128xf32>
    %245 = tpu.reciprocal %244 {approx = true} : vector<32x128xf32> -> vector<32x128xf32>
    %246 = arith.mulf %244, %245 : vector<32x128xf32>
    %cst_74 = arith.constant 2.000000e+00 : f32
    %247 = vector.broadcast %cst_74 : f32 to vector<32x128xf32>
    %248 = arith.subf %247, %246 : vector<32x128xf32>
    %249 = arith.mulf %245, %248 : vector<32x128xf32>
    %cst_75 = arith.constant 0.000000e+00 : f32
    %250 = vector.broadcast %cst_75 : f32 to vector<32x128xf32>
    %251 = arith.cmpf oeq, %244, %250 : vector<32x128xf32>
    %252 = arith.select %251, %245, %249 : vector<32x128xi1>, vector<32x128xf32>
    %253 = arith.select %242, %252, %240 : vector<32x128xi1>, vector<32x128xf32>
    %cst_76 = arith.constant 0.414213568 : f32
    %254 = vector.broadcast %cst_76 : f32 to vector<32x128xf32>
    %255 = arith.cmpf ogt, %253, %254 : vector<32x128xf32>
    %cst_77 = arith.constant 1.000000e+00 : f32
    %256 = vector.broadcast %cst_77 : f32 to vector<32x128xf32>
    %257 = arith.subf %253, %256 : vector<32x128xf32>
    %cst_78 = arith.constant 1.000000e+00 : f32
    %258 = vector.broadcast %cst_78 : f32 to vector<32x128xf32>
    %259 = arith.addf %253, %258 : vector<32x128xf32>
    %260 = tpu.reciprocal %259 {approx = true} : vector<32x128xf32> -> vector<32x128xf32>
    %261 = arith.mulf %259, %260 : vector<32x128xf32>
    %cst_79 = arith.constant 2.000000e+00 : f32
    %262 = vector.broadcast %cst_79 : f32 to vector<32x128xf32>
    %263 = arith.subf %262, %261 : vector<32x128xf32>
    %264 = arith.mulf %260, %263 : vector<32x128xf32>
    %cst_80 = arith.constant 0.000000e+00 : f32
    %265 = vector.broadcast %cst_80 : f32 to vector<32x128xf32>
    %266 = arith.cmpf oeq, %259, %265 : vector<32x128xf32>
    %267 = arith.select %266, %260, %264 : vector<32x128xi1>, vector<32x128xf32>
    %268 = arith.mulf %257, %267 : vector<32x128xf32>
    %269 = arith.select %255, %268, %253 : vector<32x128xi1>, vector<32x128xf32>
    %270 = arith.mulf %269, %269 : vector<32x128xf32>
    %271 = arith.mulf %270, %270 : vector<32x128xf32>
    %272 = arith.mulf %271, %271 : vector<32x128xf32>
    %cst_81 = arith.constant -0.333333343 : f32
    %273 = vector.broadcast %cst_81 : f32 to vector<32x128xf32>
    %274 = arith.mulf %273, %270 : vector<32x128xf32>
    %cst_82 = arith.constant 1.000000e+00 : f32
    %275 = vector.broadcast %cst_82 : f32 to vector<32x128xf32>
    %276 = arith.addf %275, %274 : vector<32x128xf32>
    %cst_83 = arith.constant -0.142857149 : f32
    %277 = vector.broadcast %cst_83 : f32 to vector<32x128xf32>
    %278 = arith.mulf %277, %270 : vector<32x128xf32>
    %cst_84 = arith.constant 2.000000e-01 : f32
    %279 = vector.broadcast %cst_84 : f32 to vector<32x128xf32>
    %280 = arith.addf %279, %278 : vector<32x128xf32>
    %281 = arith.mulf %280, %271 : vector<32x128xf32>
    %282 = arith.addf %276, %281 : vector<32x128xf32>
    %cst_85 = arith.constant -0.0909090936 : f32
    %283 = vector.broadcast %cst_85 : f32 to vector<32x128xf32>
    %284 = arith.mulf %283, %270 : vector<32x128xf32>
    %cst_86 = arith.constant 0.111111112 : f32
    %285 = vector.broadcast %cst_86 : f32 to vector<32x128xf32>
    %286 = arith.addf %285, %284 : vector<32x128xf32>
    %cst_87 = arith.constant 0.0769230798 : f32
    %287 = vector.broadcast %cst_87 : f32 to vector<32x128xf32>
    %288 = arith.mulf %287, %271 : vector<32x128xf32>
    %289 = arith.addf %286, %288 : vector<32x128xf32>
    %290 = arith.mulf %289, %272 : vector<32x128xf32>
    %291 = arith.addf %282, %290 : vector<32x128xf32>
    %292 = arith.mulf %269, %291 : vector<32x128xf32>
    %cst_88 = arith.constant 0.785398185 : f32
    %293 = vector.broadcast %cst_88 : f32 to vector<32x128xf32>
    %294 = arith.addf %293, %292 : vector<32x128xf32>
    %295 = arith.select %255, %294, %292 : vector<32x128xi1>, vector<32x128xf32>
    %cst_89 = arith.constant 1.57079637 : f32
    %296 = vector.broadcast %cst_89 : f32 to vector<32x128xf32>
    %297 = arith.subf %296, %295 : vector<32x128xf32>
    %298 = arith.select %242, %297, %295 : vector<32x128xi1>, vector<32x128xf32>
    %299 = arith.mulf %239, %298 : vector<32x128xf32>
    %300 = arith.mulf %22, %299 : vector<32x128xf32>
    %cst_90 = arith.constant 0.000000e+00 : f32
    %301 = vector.shape_cast %234 : vector<1x128xi1> to vector<1x128xi1>
    %302 = vector.broadcast %301 : vector<1x128xi1> to vector<32x128xi1>
    %303 = vector.broadcast %cst_90 : f32 to vector<32x128xf32>
    %304 = arith.select %302, %300, %303 : vector<32x128xi1>, vector<32x128xf32>
    %305 = arith.addf %232, %304 : vector<32x128xf32>
    %cst_91 = arith.constant 9.000000e+00 : f32
    %306 = vector.broadcast %cst_91 : f32 to vector<1x128xf32>
    %307 = arith.cmpf oeq, %20, %306 : vector<1x128xf32>
    %cst_92 = arith.constant 1.000000e+01 : f32
    %308 = vector.broadcast %cst_92 : f32 to vector<32x128xf32>
    %309 = arith.minimumf %28, %308 : vector<32x128xf32>
    %310 = math.exp %309 : vector<32x128xf32>
    %311 = arith.mulf %22, %310 : vector<32x128xf32>
    %cst_93 = arith.constant 0.000000e+00 : f32
    %312 = vector.shape_cast %307 : vector<1x128xi1> to vector<1x128xi1>
    %313 = vector.broadcast %312 : vector<1x128xi1> to vector<32x128xi1>
    %314 = vector.broadcast %cst_93 : f32 to vector<32x128xf32>
    %315 = arith.select %313, %311, %314 : vector<32x128xi1>, vector<32x128xf32>
    %316 = arith.addf %305, %315 : vector<32x128xf32>
    %cst_94 = arith.constant 1.000000e+01 : f32
    %317 = vector.broadcast %cst_94 : f32 to vector<1x128xf32>
    %318 = arith.cmpf oeq, %20, %317 : vector<1x128xf32>
    %cst_95 = arith.constant 1.000000e-03 : f32
    %319 = vector.broadcast %cst_95 : f32 to vector<32x128xf32>
    %320 = arith.maximumf %28, %319 : vector<32x128xf32>
    %321 = math.log %320 : vector<32x128xf32>
    %322 = arith.mulf %22, %321 : vector<32x128xf32>
    %cst_96 = arith.constant 0.000000e+00 : f32
    %323 = vector.shape_cast %318 : vector<1x128xi1> to vector<1x128xi1>
    %324 = vector.broadcast %323 : vector<1x128xi1> to vector<32x128xi1>
    %325 = vector.broadcast %cst_96 : f32 to vector<32x128xf32>
    %326 = arith.select %324, %322, %325 : vector<32x128xi1>, vector<32x128xf32>
    %327 = arith.addf %316, %326 : vector<32x128xf32>
    %328 = arith.mulf %22, %24 : vector<32x128xf32>
    %329 = vector.broadcast %17 : vector<1x128xf32> to vector<32x128xf32>
    %330 = arith.addf %328, %329 : vector<32x128xf32>
    %331 = arith.mulf %330, %24 : vector<32x128xf32>
    %cst_97 = arith.constant 1.100000e+01 : f32
    %332 = vector.broadcast %cst_97 : f32 to vector<1x128xf32>
    %333 = arith.cmpf oeq, %20, %332 : vector<1x128xf32>
    %cst_98 = arith.constant 0.000000e+00 : f32
    %334 = vector.shape_cast %333 : vector<1x128xi1> to vector<1x128xi1>
    %335 = vector.broadcast %334 : vector<1x128xi1> to vector<32x128xi1>
    %336 = vector.broadcast %cst_98 : f32 to vector<32x128xf32>
    %337 = arith.select %335, %330, %336 : vector<32x128xi1>, vector<32x128xf32>
    %338 = arith.addf %327, %337 : vector<32x128xf32>
    %cst_99 = arith.constant 1.200000e+01 : f32
    %339 = vector.broadcast %cst_99 : f32 to vector<1x128xf32>
    %340 = arith.cmpf oeq, %20, %339 : vector<1x128xf32>
    %341 = vector.broadcast %18 : vector<1x128xf32> to vector<32x128xf32>
    %342 = arith.addf %331, %341 : vector<32x128xf32>
    %cst_100 = arith.constant 0.000000e+00 : f32
    %343 = vector.shape_cast %340 : vector<1x128xi1> to vector<1x128xi1>
    %344 = vector.broadcast %343 : vector<1x128xi1> to vector<32x128xi1>
    %345 = vector.broadcast %cst_100 : f32 to vector<32x128xf32>
    %346 = arith.select %344, %342, %345 : vector<32x128xi1>, vector<32x128xf32>
    %347 = arith.addf %338, %346 : vector<32x128xf32>
    %cst_101 = arith.constant 1.300000e+01 : f32
    %348 = vector.broadcast %cst_101 : f32 to vector<1x128xf32>
    %349 = arith.cmpf oeq, %20, %348 : vector<1x128xf32>
    %350 = arith.mulf %331, %24 : vector<32x128xf32>
    %351 = vector.broadcast %18 : vector<1x128xf32> to vector<32x128xf32>
    %352 = arith.addf %350, %351 : vector<32x128xf32>
    %cst_102 = arith.constant 0.000000e+00 : f32
    %353 = vector.shape_cast %349 : vector<1x128xi1> to vector<1x128xi1>
    %354 = vector.broadcast %353 : vector<1x128xi1> to vector<32x128xi1>
    %355 = vector.broadcast %cst_102 : f32 to vector<32x128xf32>
    %356 = arith.select %354, %352, %355 : vector<32x128xi1>, vector<32x128xf32>
    %357 = arith.addf %347, %356 : vector<32x128xf32>
    %358 = vector.extract_strided_slice %15 {offsets = [4, 0], sizes = [1, 128], strides = [1, 1]} : vector<8x128xf32> to vector<1x128xf32>
    %359 = vector.extract_strided_slice %15 {offsets = [5, 0], sizes = [1, 128], strides = [1, 1]} : vector<8x128xf32> to vector<1x128xf32>
    %360 = vector.extract_strided_slice %15 {offsets = [6, 0], sizes = [1, 128], strides = [1, 1]} : vector<8x128xf32> to vector<1x128xf32>
    %361 = arith.maximumf %358, %359 : vector<1x128xf32>
    %362 = arith.maximumf %361, %360 : vector<1x128xf32>
    %363 = vector.extract_strided_slice %15 {offsets = [4, 0], sizes = [3, 128], strides = [1, 1]} : vector<8x128xf32> to vector<3x128xf32>
    %364 = vector.broadcast %362 : vector<1x128xf32> to vector<3x128xf32>
    %365 = arith.subf %363, %364 : vector<3x128xf32>
    %366 = math.exp %365 : vector<3x128xf32>
    %367 = vector.extract_strided_slice %366 {offsets = [0, 0], sizes = [1, 128], strides = [1, 1]} : vector<3x128xf32> to vector<1x128xf32>
    %368 = vector.extract_strided_slice %366 {offsets = [1, 0], sizes = [1, 128], strides = [1, 1]} : vector<3x128xf32> to vector<1x128xf32>
    %369 = vector.extract_strided_slice %366 {offsets = [2, 0], sizes = [1, 128], strides = [1, 1]} : vector<3x128xf32> to vector<1x128xf32>
    %370 = arith.addf %367, %368 : vector<1x128xf32>
    %371 = arith.addf %370, %369 : vector<1x128xf32>
    %372 = tpu.reciprocal %371 {approx = true} : vector<1x128xf32> -> vector<1x128xf32>
    %373 = arith.mulf %371, %372 : vector<1x128xf32>
    %cst_103 = arith.constant 2.000000e+00 : f32
    %374 = vector.broadcast %cst_103 : f32 to vector<1x128xf32>
    %375 = arith.subf %374, %373 : vector<1x128xf32>
    %376 = arith.mulf %372, %375 : vector<1x128xf32>
    %cst_104 = arith.constant 0.000000e+00 : f32
    %377 = vector.broadcast %cst_104 : f32 to vector<1x128xf32>
    %378 = arith.cmpf oeq, %371, %377 : vector<1x128xf32>
    %379 = arith.select %378, %372, %376 : vector<1x128xi1>, vector<1x128xf32>
    %380 = arith.subf %367, %368 : vector<1x128xf32>
    %381 = arith.mulf %380, %379 : vector<1x128xf32>
    %382 = arith.mulf %381, %19 : vector<1x128xf32>
    %383 = arith.mulf %369, %379 : vector<1x128xf32>
    %c127_i32 = arith.constant 127 : i32
    %384 = tpu.dynamic_rotate %357 by %c127_i32 dim 1 : vector<32x128xf32>, i32 -> vector<32x128xf32>
    %385 = vector.broadcast %382 : vector<1x128xf32> to vector<32x128xf32>
    %386 = arith.mulf %385, %357 : vector<32x128xf32>
    %387 = vector.broadcast %383 : vector<1x128xf32> to vector<32x128xf32>
    %388 = arith.mulf %387, %384 : vector<32x128xf32>
    %389 = arith.addf %386, %388 : vector<32x128xf32>
    %cst_105 = arith.constant dense<0.000000e+00> : vector<32xf32>
    %390 = vector.multi_reduction <add>, %389, %cst_105 [1] : vector<32x128xf32> to vector<32xf32>
    %391 = vector.shape_cast %390 : vector<32xf32> to vector<32x1xf32>
    %392 = arith.subf %391, %5 : vector<32x1xf32>
    %393 = math.absf %392 : vector<32x1xf32>
    %cst_106 = arith.constant 1.000000e+00 : f32
    %394 = vector.broadcast %cst_106 : f32 to vector<32x1xf32>
    %395 = arith.cmpf olt, %393, %394 : vector<32x1xf32>
    %cst_107 = arith.constant 5.000000e-01 : f32
    %396 = vector.broadcast %cst_107 : f32 to vector<32x1xf32>
    %397 = arith.mulf %396, %392 : vector<32x1xf32>
    %398 = arith.mulf %397, %392 : vector<32x1xf32>
    %cst_108 = arith.constant 5.000000e-01 : f32
    %399 = vector.broadcast %cst_108 : f32 to vector<32x1xf32>
    %400 = arith.subf %393, %399 : vector<32x1xf32>
    %401 = arith.select %395, %398, %400 : vector<32x1xi1>, vector<32x1xf32>
    %c0_109 = arith.constant 0 : index
    %c0_110 = arith.constant 0 : index
    %402 = vector.load %arg4[%c0_109, %c0_110] : memref<32x2xf32, #tpu.memory_space<vmem>>, vector<32x1xf32>
    tpu.vector_store %arg4[%c0_109, %c0_110], %391 {strides = array<i32>} : memref<32x2xf32, #tpu.memory_space<vmem>>, vector<32x1xf32>,
    %c0_111 = arith.constant 0 : index
    %c1 = arith.constant 1 : index
    %403 = vector.load %arg4[%c0_111, %c1] : memref<32x2xf32, #tpu.memory_space<vmem>>, vector<32x1xf32>
    tpu.vector_store %arg4[%c0_111, %c1], %401 {strides = array<i32>} : memref<32x2xf32, #tpu.memory_space<vmem>>, vector<32x1xf32>,
    return
  }
  func.func @transform_0(%arg0: i32) -> (i32, i32) {
    %c0_i32 = arith.constant 0 : i32
    %c0_i32_0 = arith.constant 0 : i32
    %c0_i32_1 = arith.constant 0 : i32
    return %c0_i32, %c0_i32_0 : i32, i32
  }
  func.func @transform_1(%arg0: i32) -> (i32, i32) {
    %c0_i32 = arith.constant 0 : i32
    %c0_i32_0 = arith.constant 0 : i32
    return %arg0, %c0_i32 : i32, i32
  }
  func.func @transform_2(%arg0: i32) -> (i32, i32) {
    %c0_i32 = arith.constant 0 : i32
    %c0_i32_0 = arith.constant 0 : i32
    %c0_i32_1 = arith.constant 0 : i32
    return %c0_i32, %c0_i32_0 : i32, i32
  }
  func.func @transform_3(%arg0: i32) -> (i32, i32) {
    %c0_i32 = arith.constant 0 : i32
    %c0_i32_0 = arith.constant 0 : i32
    return %arg0, %c0_i32 : i32, i32
  }
}

</mosaic_0001>

<llo_original>
// kernel: _forward_impl.1
$region0: #{_forward_impl.1}
  #allocation0 [shape = 'u32[]', space=smem, size = 0x4, offset = 0x4, fixed_abs, tag = 'smem constant byte address 0x4 - core index']
  #allocation1 [shape = 'u32[72,128]{1,0:T(1,128)}', space=vmem, size = 0x9000, scoped, tag = 'internal scratch']
  %s0 = inlined_call_operand.vmem [shape: f32[1,2], index: 0, kind: input, shape index: {}]
  %s1 = inlined_call_operand.vmem [shape: f32[128,2], index: 1, kind: input, shape index: {}]
  %s2 = inlined_call_operand.vmem [shape: f32[8,128], index: 2, kind: input, shape index: {}]
  %s3 = inlined_call_operand.vmem [shape: f32[128,2], index: 3, kind: output, shape index: {}]
  %s4 = sld [smem:[#allocation0]]
  $region45: #{_forward_impl.1} parent=0
    _
  %s6 = ssub.s32 1, %s4
  %s7 = scalar_select 0, %s6, %s4
  loop: start=0, step=1, limit=6
  $region2: #{_forward_impl.1} parent=0 // loop_pre_header
    _
  $region3: #{_forward_impl.1} parent=0 // loop_header
    %s9 = sphi 0, %s13
    %p10 = scmp.ge.s32.totalorder %s9, 6
    %s17 = sphi 0, %s17
    %s19 = sphi 0, %s17
    %s20 = sphi 0, %s19
    %s34 = sphi 0, %s20
    %s40 = sphi 0, %s42
    %s43 = sphi 0, %s40
    %s44 = sphi 0, %s43
    %s60 = sphi 0, %s44
    %s64 = sphi 0, %s64
    %s66 = sphi 0, %s64
    %s67 = sphi 0, %s66
    %s81 = sphi 0, %s67
    %s87 = sphi 0, %s89
    %s90 = sphi 0, %s87
    %s91 = sphi 0, %s90
    %s107 = sphi 0, %s91
  $region4: #{_forward_impl.1} parent=0 // loop_header_branch
    %12 = sbr.rel (%p10) target = $region8
  $region5: #{_forward_impl.1} parent=0 // loop_body
    %s14 = ssub.s32 %s9, 1
    %s15 = ssub.s32 %s9, 2
    %s16 = sadd.s32 %s9, 1
    %s18 = sadd.s32 %s17, 1
    %p21 = scmp.eq.s32.totalorder %s9, 3
    %p22 = scmp.ne.s32.totalorder %s17, %s19
    %p23 = scmp.eq.s32.totalorder %s9, 0
    %p24 = por %p22, %p23
    %p25 = scmp.ne.s32.totalorder %s17, %s19
    %p26 = scmp.eq.s32.totalorder %s14, 3
    %p27 = por %p25, %p26
    %p28 = scmp.ne.s32.totalorder %s19, %s20
    %p29 = scmp.eq.s32.totalorder %s14, 0
    %p30 = por %p28, %p29
    %p31 = scmp.ne.s32.totalorder %s19, %s20
    %p32 = scmp.eq.s32.totalorder %s15, 3
    %p33 = por %p31, %p32
    %p35 = scmp.ne.s32.totalorder %s20, %s34
    %p36 = scmp.eq.s32.totalorder %s15, 0
    %p37 = por %p35, %p36
    %s38 = ssub.s32 %s9, %s16
    %p39 = scmp.eq.s32.totalorder %s38, 0
    %s41 = sadd.s32 %s40, 1
    %s42 = scalar_select %p39, %s40, %s41
    %p45 = pneg %p39
    %p46 = scmp.eq.s32.totalorder %s9, 3
    %p47 = por %p45, %p46
    %p48 = scmp.ne.s32.totalorder %s40, %s43
    %p49 = scmp.eq.s32.totalorder %s9, 0
    %p50 = por %p48, %p49
    %p51 = scmp.ne.s32.totalorder %s40, %s43
    %p52 = scmp.eq.s32.totalorder %s14, 3
    %p53 = por %p51, %p52
    %p54 = scmp.ne.s32.totalorder %s43, %s44
    %p55 = scmp.eq.s32.totalorder %s14, 0
    %p56 = por %p54, %p55
    %p57 = scmp.ne.s32.totalorder %s43, %s44
    %p58 = scmp.eq.s32.totalorder %s15, 3
    %p59 = por %p57, %p58
    %p61 = scmp.ne.s32.totalorder %s44, %s60
    %p62 = scmp.eq.s32.totalorder %s15, 0
    %p63 = por %p61, %p62
    %s65 = sadd.s32 %s64, 1
    %p68 = scmp.eq.s32.totalorder %s9, 3
    %p69 = scmp.ne.s32.totalorder %s64, %s66
    %p70 = scmp.eq.s32.totalorder %s9, 0
    %p71 = por %p69, %p70
    %p72 = scmp.ne.s32.totalorder %s64, %s66
    %p73 = scmp.eq.s32.totalorder %s14, 3
    %p74 = por %p72, %p73
    %p75 = scmp.ne.s32.totalorder %s66, %s67
    %p76 = scmp.eq.s32.totalorder %s14, 0
    %p77 = por %p75, %p76
    %p78 = scmp.ne.s32.totalorder %s66, %s67
    %p79 = scmp.eq.s32.totalorder %s15, 3
    %p80 = por %p78, %p79
    %p82 = scmp.ne.s32.totalorder %s67, %s81
    %p83 = scmp.eq.s32.totalorder %s15, 0
    %p84 = por %p82, %p83
    %s85 = ssub.s32 %s9, %s16
    %p86 = scmp.eq.s32.totalorder %s85, 0
    %s88 = sadd.s32 %s87, 1
    %s89 = scalar_select %p86, %s87, %s88
    %p92 = pneg %p86
    %p93 = scmp.eq.s32.totalorder %s9, 3
    %p94 = por %p92, %p93
    %p95 = scmp.ne.s32.totalorder %s87, %s90
    %p96 = scmp.eq.s32.totalorder %s9, 0
    %p97 = por %p95, %p96
    %p98 = scmp.ne.s32.totalorder %s87, %s90
    %p99 = scmp.eq.s32.totalorder %s14, 3
    %p100 = por %p98, %p99
    %p101 = scmp.ne.s32.totalorder %s90, %s91
    %p102 = scmp.eq.s32.totalorder %s14, 0
    %p103 = por %p101, %p102
    %p104 = scmp.ne.s32.totalorder %s90, %s91
    %p105 = scmp.eq.s32.totalorder %s15, 3
    %p106 = por %p104, %p105
    %p108 = scmp.ne.s32.totalorder %s91, %s107
    %p109 = scmp.eq.s32.totalorder %s15, 0
    %p110 = por %p108, %p109
    %p111 = scmp.le.s32.totalorder 1, %s9
    %p112 = scmp.lt.s32.totalorder %s9, 5
    %p113 = pnand %p111, %p112
    %p114 = pneg %p113
    // Predicated region
    $region9: #{_forward_impl.1} parent=5 // pred_check
      _
    $region10: #{_forward_impl.1} parent=5 // pred_check_branch
      %116 = sbr.rel (%p113) target = $region12
    $region11: #{_forward_impl.1} parent=5 // pred_region
      %s117 = ssub.s32 %s9, 1
      // Predicated region
      $region13: #{_forward_impl.1} parent=11 // pred_check
        %p118 = pneg %p30
      $region14: #{_forward_impl.1} parent=11 // pred_check_branch
        %120 = sbr.rel (%p118) target = $region16
      $region15: #{_forward_impl.1} parent=11 // pred_region
        _
      $region16: #{_forward_impl.1} parent=11 // pred_fallthru
        _
      // Predicated region
      $region17: #{_forward_impl.1} parent=11 // pred_check
        %p121 = pneg %p77
      $region18: #{_forward_impl.1} parent=11 // pred_check_branch
        %123 = sbr.rel (%p121) target = $region20
      $region19: #{_forward_impl.1} parent=11 // pred_region
        _
      $region20: #{_forward_impl.1} parent=11 // pred_fallthru
        _
    $region12: #{_forward_impl.1} parent=5 // pred_fallthru
      _
    %p124 = scmp.lt.s32.totalorder %s9, 4
    // Predicated region
    $region21: #{_forward_impl.1} parent=5 // pred_check
      %p125 = pneg %p124
    $region22: #{_forward_impl.1} parent=5 // pred_check_branch
      %127 = sbr.rel (%p125) target = $region24
    $region23: #{_forward_impl.1} parent=5 // pred_region
      // Predicated region
      $region25: #{_forward_impl.1} parent=23 // pred_check
        %p128 = pneg %p50
      $region26: #{_forward_impl.1} parent=23 // pred_check_branch
        %130 = sbr.rel (%p128) target = $region28
      $region27: #{_forward_impl.1} parent=23 // pred_region
        %s131 = smul.u32 4, %s9
        %p132 = scmp.lt.s32.totalorder %s131, 15
        %s133 = scalar_select %p132, %s131, 15
        %s134 = smul.addr %s133, 8
        %s135 = scalar_lea.vmem %s1, %s134
        %s136 = smul.u32 4, %s9
      $region28: #{_forward_impl.1} parent=23 // pred_fallthru
        _
    $region24: #{_forward_impl.1} parent=5 // pred_fallthru
      _
    %p137 = scmp.le.s32.totalorder 1, %s9
    %p138 = scmp.lt.s32.totalorder %s9, 5
    %p139 = pnand %p137, %p138
    %p140 = pneg %p139
    // Predicated region
    $region29: #{_forward_impl.1} parent=5 // pred_check
      _
    $region30: #{_forward_impl.1} parent=5 // pred_check_branch
      %142 = sbr.rel (%p139) target = $region32
    $region31: #{_forward_impl.1} parent=5 // pred_region
      %s143 = ssub.s32 %s9, 1
      %p144 = pneg %p30
      %p145 = pneg %p27
      %s146 = smul.u32 4, %s14
      %p147 = scmp.lt.s32.totalorder %s146, 15
      %s148 = scalar_select %p147, %s146, 15
      %s149 = smul.addr %s148, 8
      %s150 = scalar_lea.vmem %s1, %s149
      %p151 = pneg %p56
      %p152 = pneg %p53
      %p153 = pneg %p77
      %p154 = pneg %p74
      %p155 = pneg %p103
      %p156 = pneg %p100
      %s157 = smul.u32 4, %s14
      %p158 = scmp.lt.s32.totalorder %s157, 15
      %s159 = scalar_select %p158, %s157, 15
      %s160 = smul.addr %s159, 8
      %s161 = scalar_lea.vmem %s3, %s160
      %s162 = smul.u32 4, %s14
      %p163 = scmp.lt.s32.totalorder %s162, 15
      %s164 = scalar_select %p163, %s162, 15
      %s165 = smul.addr %s164, 8
      %s166 = scalar_lea.vmem %s1, %s165
      %s167 = smul.u32 4, %s14
      %s168 = smul.u32 4, %s14
      %p169 = scmp.lt.s32.totalorder %s168, 15
      %s170 = scalar_select %p169, %s168, 15
      %s171 = smul.addr %s170, 8
      %s172 = scalar_lea.vmem %s3, %s171
      %s173 = smul.u32 4, %s14
      %v174 = vld [vmem:[%s0] sm:$0x1]
      %v175 = vld [vmem:[%s166] sm:$0xff]
      %v176 = vld [vmem:[%s166 + $0x8] sm:$0xff]
      %v177 = vld [vmem:[%s166 + $0x10] sm:$0xff]
      %v178 = vld [vmem:[%s166 + $0x18] sm:$0xff]
      %v180 = vperm.slane %v174, 0
      %v182 = vmul.f32 %v180, %v175
      %v183 = vmul.f32 %v180, %v176
      %v184 = vmul.f32 %v180, %v177
      %v185 = vmul.f32 %v180, %v178
      %186 = vrot.lane.b32.xlu0 %v180, 127
      %v187 = vpop.permute.xlu0 %186
      %v189 = vadd.f32 %v182, %v187
      %v190 = vadd.f32 %v183, %v187
      %v191 = vadd.f32 %v184, %v187
      %v192 = vadd.f32 %v185, %v187
      %v193 = vadd.f32 %v175, %v189
      %v194 = vadd.f32 %v176, %v190
      %v195 = vadd.f32 %v177, %v191
      %v196 = vadd.f32 %v178, %v192
      %v197 = vmax.f32 %v193, 1e-06
      %v198 = vmax.f32 %v194, 1e-06
      %v199 = vmax.f32 %v195, 1e-06
      %v200 = vmax.f32 %v196, 1e-06
      %v201 = vmin.f32 %v197, 1000000.0
      %v202 = vmin.f32 %v198, 1000000.0
      %v203 = vmin.f32 %v199, 1000000.0
      %v204 = vmin.f32 %v200, 1000000.0
      %v205 = vld [vmem:[%s2] sm:$0xff]
      %v206 = vperm.slane %v205, 0
      %208 = vset.pattern.permute.xlu0 0
      %209 = vperm.xlu0 %208, %v201
      %v210 = vpop.permute.xlu0 %209
      %213 = vset.pattern.permute.xlu0 0
      %214 = vperm.xlu0 %213, %v202
      %v215 = vpop.permute.xlu0 %214
      %218 = vset.pattern.permute.xlu0 0
      %219 = vperm.xlu0 %218, %v203
      %v220 = vpop.permute.xlu0 %219
      %223 = vset.pattern.permute.xlu0 0
      %224 = vperm.xlu0 %223, %v204
      %v225 = vpop.permute.xlu0 %224
      %v227 = vperm.slane %v205, 1
      %v228 = vmul.f32 %v227, %v210
      %v229 = vmul.f32 %v227, %v215
      %v230 = vmul.f32 %v227, %v220
      %v231 = vmul.f32 %v227, %v225
      %v232 = vperm.slane %v205, 2
      %v233 = vadd.f32 %v228, %v232
      %v234 = vadd.f32 %v229, %v232
      %v235 = vadd.f32 %v230, %v232
      %v236 = vadd.f32 %v231, %v232
      %v237 = vmul.f32 %v233, 0.31830987
      %v238 = vmul.f32 %v234, 0.31830987
      %v239 = vmul.f32 %v235, 0.31830987
      %v240 = vmul.f32 %v236, 0.31830987
      %v241 = vadd.f32 %v237, 0.5
      %v242 = vadd.f32 %v238, 0.5
      %v243 = vadd.f32 %v239, 0.5
      %v244 = vadd.f32 %v240, 0.5
      %v245 = vcvt.f32.s32.to.zero.pseudo %v241
      %v246 = vcvt.f32.s32.to.zero.pseudo %v242
      %v247 = vcvt.f32.s32.to.zero.pseudo %v243
      %v248 = vcvt.f32.s32.to.zero.pseudo %v244
      %v249 = vcvt.s32.f32 %v245
      %v250 = vcvt.s32.f32 %v246
      %v251 = vcvt.s32.f32 %v247
      %v252 = vcvt.s32.f32 %v248
      %vm253 = vcmp.gt.f32.partialorder %v249, %v241
      %vm254 = vcmp.gt.f32.partialorder %v250, %v242
      %vm255 = vcmp.gt.f32.partialorder %v251, %v243
      %vm256 = vcmp.gt.f32.partialorder %v252, %v244
      %v257 = vsub.f32 %v249, 1.0
      %v258 = vsub.f32 %v250, 1.0
      %v259 = vsub.f32 %v251, 1.0
      %v260 = vsub.f32 %v252, 1.0
      %v261 = vsel %vm253, %v257, %v249
      %v262 = vsel %vm254, %v258, %v250
      %v263 = vsel %vm255, %v259, %v251
      %v264 = vsel %vm256, %v260, %v252
      %v265 = vmul.f32 %v261, 3.1415927
      %v266 = vmul.f32 %v262, 3.1415927
      %v267 = vmul.f32 %v263, 3.1415927
      %v268 = vmul.f32 %v264, 3.1415927
      %v269 = vsub.f32 %v233, %v265
      %v270 = vsub.f32 %v234, %v266
      %v271 = vsub.f32 %v235, %v267
      %v272 = vsub.f32 %v236, %v268
      %v273 = vmul.f32 %v261, 0.5
      %v274 = vmul.f32 %v262, 0.5
      %v275 = vmul.f32 %v263, 0.5
      %v276 = vmul.f32 %v264, 0.5
      %v277 = vcvt.f32.s32.to.zero.pseudo %v273
      %v278 = vcvt.f32.s32.to.zero.pseudo %v274
      %v279 = vcvt.f32.s32.to.zero.pseudo %v275
      %v280 = vcvt.f32.s32.to.zero.pseudo %v276
      %v281 = vcvt.s32.f32 %v277
      %v282 = vcvt.s32.f32 %v278
      %v283 = vcvt.s32.f32 %v279
      %v284 = vcvt.s32.f32 %v280
      %vm285 = vcmp.gt.f32.partialorder %v281, %v273
      %vm286 = vcmp.gt.f32.partialorder %v282, %v274
      %vm287 = vcmp.gt.f32.partialorder %v283, %v275
      %vm288 = vcmp.gt.f32.partialorder %v284, %v276
      %v289 = vsub.f32 %v281, 1.0
      %v290 = vsub.f32 %v282, 1.0
      %v291 = vsub.f32 %v283, 1.0
      %v292 = vsub.f32 %v284, 1.0
      %v293 = vsel %vm285, %v289, %v281
      %v294 = vsel %vm286, %v290, %v282
      %v295 = vsel %vm287, %v291, %v283
      %v296 = vsel %vm288, %v292, %v284
      %v297 = vmul.f32 %v293, 2.0
      %v298 = vmul.f32 %v294, 2.0
      %v299 = vmul.f32 %v295, 2.0
      %v300 = vmul.f32 %v296, 2.0
      %v301 = vsub.f32 %v261, %v297
      %v302 = vsub.f32 %v262, %v298
      %v303 = vsub.f32 %v263, %v299
      %v304 = vsub.f32 %v264, %v300
      %v305 = vmul.f32 %v301, 2.0
      %v306 = vmul.f32 %v302, 2.0
      %v307 = vmul.f32 %v303, 2.0
      %v308 = vmul.f32 %v304, 2.0
      %v309 = vsub.f32 1.0, %v305
      %v310 = vsub.f32 1.0, %v306
      %v311 = vsub.f32 1.0, %v307
      %v312 = vsub.f32 1.0, %v308
      %v313 = vmul.f32 %v269, %v269
      %v314 = vmul.f32 %v270, %v270
      %v315 = vmul.f32 %v271, %v271
      %v316 = vmul.f32 %v272, %v272
      %v317 = vmul.f32 %v313, %v313
      %v318 = vmul.f32 %v314, %v314
      %v319 = vmul.f32 %v315, %v315
      %v320 = vmul.f32 %v316, %v316
      %v321 = vmul.f32 %v317, %v317
      %v322 = vmul.f32 %v318, %v318
      %v323 = vmul.f32 %v319, %v319
      %v324 = vmul.f32 %v320, %v320
      %v325 = vmul.f32 %v313, -0.16666667
      %v326 = vmul.f32 %v314, -0.16666667
      %v327 = vmul.f32 %v315, -0.16666667
      %v328 = vmul.f32 %v316, -0.16666667
      %v329 = vadd.f32 %v325, 1.0
      %v330 = vadd.f32 %v326, 1.0
      %v331 = vadd.f32 %v327, 1.0
      %v332 = vadd.f32 %v328, 1.0
      %v333 = vmul.f32 %v313, -0.0001984127
      %v334 = vmul.f32 %v314, -0.0001984127
      %v335 = vmul.f32 %v315, -0.0001984127
      %v336 = vmul.f32 %v316, -0.0001984127
      %v337 = vadd.f32 %v333, 0.008333334
      %v338 = vadd.f32 %v334, 0.008333334
      %v339 = vadd.f32 %v335, 0.008333334
      %v340 = vadd.f32 %v336, 0.008333334
      %v341 = vmul.f32 %v337, %v317
      %v342 = vmul.f32 %v338, %v318
      %v343 = vmul.f32 %v339, %v319
      %v344 = vmul.f32 %v340, %v320
      %v345 = vadd.f32 %v329, %v341
      %v346 = vadd.f32 %v330, %v342
      %v347 = vadd.f32 %v331, %v343
      %v348 = vadd.f32 %v332, %v344
      %v349 = vmul.f32 %v313, -2.5052108e-08
      %v350 = vmul.f32 %v314, -2.5052108e-08
      %v351 = vmul.f32 %v315, -2.5052108e-08
      %v352 = vmul.f32 %v316, -2.5052108e-08
      %v353 = vadd.f32 %v349, 2.7557319e-06
      %v354 = vadd.f32 %v350, 2.7557319e-06
      %v355 = vadd.f32 %v351, 2.7557319e-06
      %v356 = vadd.f32 %v352, 2.7557319e-06
      %v357 = vmul.f32 %v317, 1.6059044e-10
      %v358 = vmul.f32 %v318, 1.6059044e-10
      %v359 = vmul.f32 %v319, 1.6059044e-10
      %v360 = vmul.f32 %v320, 1.6059044e-10
      %v361 = vadd.f32 %v353, %v357
      %v362 = vadd.f32 %v354, %v358
      %v363 = vadd.f32 %v355, %v359
      %v364 = vadd.f32 %v356, %v360
      %v365 = vmul.f32 %v361, %v321
      %v366 = vmul.f32 %v362, %v322
      %v367 = vmul.f32 %v363, %v323
      %v368 = vmul.f32 %v364, %v324
      %v369 = vadd.f32 %v345, %v365
      %v370 = vadd.f32 %v346, %v366
      %v371 = vadd.f32 %v347, %v367
      %v372 = vadd.f32 %v348, %v368
      %v373 = vmul.f32 %v269, %v369
      %v374 = vmul.f32 %v270, %v370
      %v375 = vmul.f32 %v271, %v371
      %v376 = vmul.f32 %v272, %v372
      %v377 = vmul.f32 %v309, %v373
      %v378 = vmul.f32 %v310, %v374
      %v379 = vmul.f32 %v311, %v375
      %v380 = vmul.f32 %v312, %v376
      %v381 = vmul.f32 %v313, -0.5
      %v382 = vmul.f32 %v314, -0.5
      %v383 = vmul.f32 %v315, -0.5
      %v384 = vmul.f32 %v316, -0.5
      %v385 = vadd.f32 %v381, 1.0
      %v386 = vadd.f32 %v382, 1.0
      %v387 = vadd.f32 %v383, 1.0
      %v388 = vadd.f32 %v384, 1.0
      %v389 = vmul.f32 %v313, -0.0013888889
      %v390 = vmul.f32 %v314, -0.0013888889
      %v391 = vmul.f32 %v315, -0.0013888889
      %v392 = vmul.f32 %v316, -0.0013888889
      %v393 = vadd.f32 %v389, 0.041666668
      %v394 = vadd.f32 %v390, 0.041666668
      %v395 = vadd.f32 %v391, 0.041666668
      %v396 = vadd.f32 %v392, 0.041666668
      %v397 = vmul.f32 %v393, %v317
      %v398 = vmul.f32 %v394, %v318
      %v399 = vmul.f32 %v395, %v319
      %v400 = vmul.f32 %v396, %v320
      %v401 = vadd.f32 %v385, %v397
      %v402 = vadd.f32 %v386, %v398
      %v403 = vadd.f32 %v387, %v399
      %v404 = vadd.f32 %v388, %v400
      %v405 = vmul.f32 %v313, -2.755732e-07
      %v406 = vmul.f32 %v314, -2.755732e-07
      %v407 = vmul.f32 %v315, -2.755732e-07
      %v408 = vmul.f32 %v316, -2.755732e-07
      %v409 = vadd.f32 %v405, 2.4801588e-05
      %v410 = vadd.f32 %v406, 2.4801588e-05
      %v411 = vadd.f32 %v407, 2.4801588e-05
      %v412 = vadd.f32 %v408, 2.4801588e-05
      %v413 = vmul.f32 %v317, 2.0876756e-09
      %v414 = vmul.f32 %v318, 2.0876756e-09
      %v415 = vmul.f32 %v319, 2.0876756e-09
      %v416 = vmul.f32 %v320, 2.0876756e-09
      %v417 = vadd.f32 %v409, %v413
      %v418 = vadd.f32 %v410, %v414
      %v419 = vadd.f32 %v411, %v415
      %v420 = vadd.f32 %v412, %v416
      %v421 = vmul.f32 %v417, %v321
      %v422 = vmul.f32 %v418, %v322
      %v423 = vmul.f32 %v419, %v323
      %v424 = vmul.f32 %v420, %v324
      %v425 = vadd.f32 %v401, %v421
      %v426 = vadd.f32 %v402, %v422
      %v427 = vadd.f32 %v403, %v423
      %v428 = vadd.f32 %v404, %v424
      %v429 = vmul.f32 %v309, %v425
      %v430 = vmul.f32 %v310, %v426
      %v431 = vmul.f32 %v311, %v427
      %v432 = vmul.f32 %v312, %v428
      %v433 = vrcp.pop %v377
      %v434 = vrcp.pop %v378
      %v435 = vrcp.pop %v379
      %v436 = vrcp.pop %v380
      %v437 = vmul.f32 %v377, %v433
      %v438 = vmul.f32 %v378, %v434
      %v439 = vmul.f32 %v379, %v435
      %v440 = vmul.f32 %v380, %v436
      %v441 = vsub.f32 2.0, %v437
      %v442 = vsub.f32 2.0, %v438
      %v443 = vsub.f32 2.0, %v439
      %v444 = vsub.f32 2.0, %v440
      %v445 = vmul.f32 %v433, %v441
      %v446 = vmul.f32 %v434, %v442
      %v447 = vmul.f32 %v435, %v443
      %v448 = vmul.f32 %v436, %v444
      %vm449 = vcmp.eq.f32.partialorder %v377, 0.0
      %vm450 = vcmp.eq.f32.partialorder %v378, 0.0
      %vm451 = vcmp.eq.f32.partialorder %v379, 0.0
      %vm452 = vcmp.eq.f32.partialorder %v380, 0.0
      %v453 = vsel %vm449, %v433, %v445
      %v454 = vsel %vm450, %v434, %v446
      %v455 = vsel %vm451, %v435, %v447
      %v456 = vsel %vm452, %v436, %v448
      %v457 = vrcp.pop %v429
      %v458 = vrcp.pop %v430
      %v459 = vrcp.pop %v431
      %v460 = vrcp.pop %v432
      %v461 = vmul.f32 %v429, %v457
      %v462 = vmul.f32 %v430, %v458
      %v463 = vmul.f32 %v431, %v459
      %v464 = vmul.f32 %v432, %v460
      %v465 = vsub.f32 2.0, %v461
      %v466 = vsub.f32 2.0, %v462
      %v467 = vsub.f32 2.0, %v463
      %v468 = vsub.f32 2.0, %v464
      %v469 = vmul.f32 %v457, %v465
      %v470 = vmul.f32 %v458, %v466
      %v471 = vmul.f32 %v459, %v467
      %v472 = vmul.f32 %v460, %v468
      %vm473 = vcmp.eq.f32.partialorder %v429, 0.0
      %vm474 = vcmp.eq.f32.partialorder %v430, 0.0
      %vm475 = vcmp.eq.f32.partialorder %v431, 0.0
      %vm476 = vcmp.eq.f32.partialorder %v432, 0.0
      %v477 = vsel %vm473, %v457, %v469
      %v478 = vsel %vm474, %v458, %v470
      %v479 = vsel %vm475, %v459, %v471
      %v480 = vsel %vm476, %v460, %v472
      %vm481 = vcmp.eq.f32.partialorder %v205, 0.0
      %v482 = vmul.f32 %v206, %v377
      %v483 = vmul.f32 %v206, %v378
      %v484 = vmul.f32 %v206, %v379
      %v485 = vmul.f32 %v206, %v380
      %v486 = vsel %vm481, 1, 0
      %v487 = vperm.slane %v486, 7
      %vm488 = vcmp.eq.s32.totalorder %v487, 1
      %v489 = vsel %vm488, %v482, 0.0
      %v490 = vsel %vm488, %v483, 0.0
      %v491 = vsel %vm488, %v484, 0.0
      %v492 = vsel %vm488, %v485, 0.0
      %vm493 = vcmp.eq.f32.partialorder %v205, 1.0
      %v494 = vmul.f32 %v206, %v429
      %v495 = vmul.f32 %v206, %v430
      %v496 = vmul.f32 %v206, %v431
      %v497 = vmul.f32 %v206, %v432
      %v498 = vsel %vm493, 1, 0
      %v499 = vperm.slane %v498, 7
      %vm500 = vcmp.eq.s32.totalorder %v499, 1
      %v501 = vsel %vm500, %v494, 0.0
      %v502 = vsel %vm500, %v495, 0.0
      %v503 = vsel %vm500, %v496, 0.0
      %v504 = vsel %vm500, %v497, 0.0
      %v505 = vadd.f32 %v489, %v501
      %v506 = vadd.f32 %v490, %v502
      %v507 = vadd.f32 %v491, %v503
      %v508 = vadd.f32 %v492, %v504
      %vm509 = vcmp.eq.f32.partialorder %v205, 2.0
      %v510 = vmul.f32 %v377, %v477
      %v511 = vmul.f32 %v378, %v478
      %v512 = vmul.f32 %v379, %v479
      %v513 = vmul.f32 %v380, %v480
      %v514 = vmul.f32 %v206, %v510
      %v515 = vmul.f32 %v206, %v511
      %v516 = vmul.f32 %v206, %v512
      %v517 = vmul.f32 %v206, %v513
      %v518 = vsel %vm509, 1, 0
      %v519 = vperm.slane %v518, 7
      %vm520 = vcmp.eq.s32.totalorder %v519, 1
      %v521 = vsel %vm520, %v514, 0.0
      %v522 = vsel %vm520, %v515, 0.0
      %v523 = vsel %vm520, %v516, 0.0
      %v524 = vsel %vm520, %v517, 0.0
      %v525 = vadd.f32 %v505, %v521
      %v526 = vadd.f32 %v506, %v522
      %v527 = vadd.f32 %v507, %v523
      %v528 = vadd.f32 %v508, %v524
      %vm529 = vcmp.eq.f32.partialorder %v205, 3.0
      %v530 = vmul.f32 %v206, %v453
      %v531 = vmul.f32 %v206, %v454
      %v532 = vmul.f32 %v206, %v455
      %v533 = vmul.f32 %v206, %v456
      %v534 = vsel %vm529, 1, 0
      %v535 = vperm.slane %v534, 7
      %vm536 = vcmp.eq.s32.totalorder %v535, 1
      %v537 = vsel %vm536, %v530, 0.0
      %v538 = vsel %vm536, %v531, 0.0
      %v539 = vsel %vm536, %v532, 0.0
      %v540 = vsel %vm536, %v533, 0.0
      %v541 = vadd.f32 %v525, %v537
      %v542 = vadd.f32 %v526, %v538
      %v543 = vadd.f32 %v527, %v539
      %v544 = vadd.f32 %v528, %v540
      %vm545 = vcmp.eq.f32.partialorder %v205, 4.0
      %v546 = vmul.f32 %v206, %v477
      %v547 = vmul.f32 %v206, %v478
      %v548 = vmul.f32 %v206, %v479
      %v549 = vmul.f32 %v206, %v480
      %v550 = vsel %vm545, 1, 0
      %v551 = vperm.slane %v550, 7
      %vm552 = vcmp.eq.s32.totalorder %v551, 1
      %v553 = vsel %vm552, %v546, 0.0
      %v554 = vsel %vm552, %v547, 0.0
      %v555 = vsel %vm552, %v548, 0.0
      %v556 = vsel %vm552, %v549, 0.0
      %v557 = vadd.f32 %v541, %v553
      %v558 = vadd.f32 %v542, %v554
      %v559 = vadd.f32 %v543, %v555
      %v560 = vadd.f32 %v544, %v556
      %vm561 = vcmp.eq.f32.partialorder %v205, 5.0
      %v562 = vmul.f32 %v429, %v453
      %v563 = vmul.f32 %v430, %v454
      %v564 = vmul.f32 %v431, %v455
      %v565 = vmul.f32 %v432, %v456
      %v566 = vmul.f32 %v206, %v562
      %v567 = vmul.f32 %v206, %v563
      %v568 = vmul.f32 %v206, %v564
      %v569 = vmul.f32 %v206, %v565
      %v570 = vsel %vm561, 1, 0
      %v571 = vperm.slane %v570, 7
      %vm572 = vcmp.eq.s32.totalorder %v571, 1
      %v573 = vsel %vm572, %v566, 0.0
      %v574 = vsel %vm572, %v567, 0.0
      %v575 = vsel %vm572, %v568, 0.0
      %v576 = vsel %vm572, %v569, 0.0
      %v577 = vadd.f32 %v557, %v573
      %v578 = vadd.f32 %v558, %v574
      %v579 = vadd.f32 %v559, %v575
      %v580 = vadd.f32 %v560, %v576
      %v581 = vmax.f32 %v233, -0.999
      %v582 = vmax.f32 %v234, -0.999
      %v583 = vmax.f32 %v235, -0.999
      %v584 = vmax.f32 %v236, -0.999
      %v585 = vmin.f32 %v581, 0.999
      %v586 = vmin.f32 %v582, 0.999
      %v587 = vmin.f32 %v583, 0.999
      %v588 = vmin.f32 %v584, 0.999
      %vm589 = vcmp.lt.f32.partialorder %v585, 0.0
      %vm590 = vcmp.lt.f32.partialorder %v586, 0.0
      %vm591 = vcmp.lt.f32.partialorder %v587, 0.0
      %vm592 = vcmp.lt.f32.partialorder %v588, 0.0
      %v593 = vsel %vm589, -1.0, 1.0
      %v594 = vsel %vm590, -1.0, 1.0
      %v595 = vsel %vm591, -1.0, 1.0
      %v596 = vsel %vm592, -1.0, 1.0
      %v597 = vand.u32 2147483647, %v585
      %v598 = vand.u32 2147483647, %v586
      %v599 = vand.u32 2147483647, %v587
      %v600 = vand.u32 2147483647, %v588
      %vm601 = vcmp.gt.f32.partialorder %v597, 0.5
      %vm602 = vcmp.gt.f32.partialorder %v598, 0.5
      %vm603 = vcmp.gt.f32.partialorder %v599, 0.5
      %vm604 = vcmp.gt.f32.partialorder %v600, 0.5
      %v605 = vsub.f32 1.0, %v597
      %v606 = vsub.f32 1.0, %v598
      %v607 = vsub.f32 1.0, %v599
      %v608 = vsub.f32 1.0, %v600
      %v609 = vmul.f32 %v605, 0.5
      %v610 = vmul.f32 %v606, 0.5
      %v611 = vmul.f32 %v607, 0.5
      %v612 = vmul.f32 %v608, 0.5
      %v613 = vmax.f32 %v609, 0.0
      %v614 = vmax.f32 %v610, 0.0
      %v615 = vmax.f32 %v611, 0.0
      %v616 = vmax.f32 %v612, 0.0
      %v617 = vrsqrt.pop %v613
      %v618 = vmul.f32 %v617, %v613
      %v619 = vmul.f32 %v618, %v617
      %v620 = vmul.f32 0.5, %v619
      %v621 = vsub.f32 1.5, %v620
      %v622 = vmul.f32 %v617, %v621
      %v623 = vmul.f32 %v613, %v622
      %vm624 = vcmp.eq.f32.partialorder %v613, inf
      %v625 = vsel %vm624, %v613, %v623
      %vm626 = vcmp.eq.f32.partialorder %v613, 0.0
      %v627 = vand.u32 %v613, 2147483648
      %v628 = vsel %vm626, %v627, %v625
      %v629 = vrsqrt.pop %v614
      %v630 = vmul.f32 %v629, %v614
      %v631 = vmul.f32 %v630, %v629
      %v632 = vmul.f32 0.5, %v631
      %v633 = vsub.f32 1.5, %v632
      %v634 = vmul.f32 %v629, %v633
      %v635 = vmul.f32 %v614, %v634
      %vm636 = vcmp.eq.f32.partialorder %v614, inf
      %v637 = vsel %vm636, %v614, %v635
      %vm638 = vcmp.eq.f32.partialorder %v614, 0.0
      %v639 = vand.u32 %v614, 2147483648
      %v640 = vsel %vm638, %v639, %v637
      %v641 = vrsqrt.pop %v615
      %v642 = vmul.f32 %v641, %v615
      %v643 = vmul.f32 %v642, %v641
      %v644 = vmul.f32 0.5, %v643
      %v645 = vsub.f32 1.5, %v644
      %v646 = vmul.f32 %v641, %v645
      %v647 = vmul.f32 %v615, %v646
      %vm648 = vcmp.eq.f32.partialorder %v615, inf
      %v649 = vsel %vm648, %v615, %v647
      %vm650 = vcmp.eq.f32.partialorder %v615, 0.0
      %v651 = vand.u32 %v615, 2147483648
      %v652 = vsel %vm650, %v651, %v649
      %v653 = vrsqrt.pop %v616
      %v654 = vmul.f32 %v653, %v616
      %v655 = vmul.f32 %v654, %v653
      %v656 = vmul.f32 0.5, %v655
      %v657 = vsub.f32 1.5, %v656
      %v658 = vmul.f32 %v653, %v657
      %v659 = vmul.f32 %v616, %v658
      %vm660 = vcmp.eq.f32.partialorder %v616, inf
      %v661 = vsel %vm660, %v616, %v659
      %vm662 = vcmp.eq.f32.partialorder %v616, 0.0
      %v663 = vand.u32 %v616, 2147483648
      %v664 = vsel %vm662, %v663, %v661
      %v665 = vsel %vm601, %v628, %v597
      %v666 = vsel %vm602, %v640, %v598
      %v667 = vsel %vm603, %v652, %v599
      %v668 = vsel %vm604, %v664, %v600
      %v669 = vmul.f32 %v665, %v665
      %v670 = vmul.f32 %v666, %v666
      %v671 = vmul.f32 %v667, %v667
      %v672 = vmul.f32 %v668, %v668
      %v673 = vmul.f32 %v669, %v669
      %v674 = vmul.f32 %v670, %v670
      %v675 = vmul.f32 %v671, %v671
      %v676 = vmul.f32 %v672, %v672
      %v677 = vmul.f32 %v673, %v673
      %v678 = vmul.f32 %v674, %v674
      %v679 = vmul.f32 %v675, %v675
      %v680 = vmul.f32 %v676, %v676
      %v681 = vmul.f32 %v669, 0.16666667
      %v682 = vmul.f32 %v670, 0.16666667
      %v683 = vmul.f32 %v671, 0.16666667
      %v684 = vmul.f32 %v672, 0.16666667
      %v685 = vadd.f32 %v681, 1.0
      %v686 = vadd.f32 %v682, 1.0
      %v687 = vadd.f32 %v683, 1.0
      %v688 = vadd.f32 %v684, 1.0
      %v689 = vmul.f32 %v669, 0.04464286
      %v690 = vmul.f32 %v670, 0.04464286
      %v691 = vmul.f32 %v671, 0.04464286
      %v692 = vmul.f32 %v672, 0.04464286
      %v693 = vadd.f32 %v689, 0.075
      %v694 = vadd.f32 %v690, 0.075
      %v695 = vadd.f32 %v691, 0.075
      %v696 = vadd.f32 %v692, 0.075
      %v697 = vmul.f32 %v693, %v673
      %v698 = vmul.f32 %v694, %v674
      %v699 = vmul.f32 %v695, %v675
      %v700 = vmul.f32 %v696, %v676
      %v701 = vadd.f32 %v685, %v697
      %v702 = vadd.f32 %v686, %v698
      %v703 = vadd.f32 %v687, %v699
      %v704 = vadd.f32 %v688, %v700
      %v705 = vmul.f32 %v669, 0.022372158
      %v706 = vmul.f32 %v670, 0.022372158
      %v707 = vmul.f32 %v671, 0.022372158
      %v708 = vmul.f32 %v672, 0.022372158
      %v709 = vadd.f32 %v705, 0.030381944
      %v710 = vadd.f32 %v706, 0.030381944
      %v711 = vadd.f32 %v707, 0.030381944
      %v712 = vadd.f32 %v708, 0.030381944
      %v713 = vmul.f32 %v673, 0.017352764
      %v714 = vmul.f32 %v674, 0.017352764
      %v715 = vmul.f32 %v675, 0.017352764
      %v716 = vmul.f32 %v676, 0.017352764
      %v717 = vadd.f32 %v709, %v713
      %v718 = vadd.f32 %v710, %v714
      %v719 = vadd.f32 %v711, %v715
      %v720 = vadd.f32 %v712, %v716
      %v721 = vmul.f32 %v717, %v677
      %v722 = vmul.f32 %v718, %v678
      %v723 = vmul.f32 %v719, %v679
      %v724 = vmul.f32 %v720, %v680
      %v725 = vadd.f32 %v701, %v721
      %v726 = vadd.f32 %v702, %v722
      %v727 = vadd.f32 %v703, %v723
      %v728 = vadd.f32 %v704, %v724
      %v729 = vmul.f32 %v665, %v725
      %v730 = vmul.f32 %v666, %v726
      %v731 = vmul.f32 %v667, %v727
      %v732 = vmul.f32 %v668, %v728
      %v733 = vmul.f32 %v729, 2.0
      %v734 = vmul.f32 %v730, 2.0
      %v735 = vmul.f32 %v731, 2.0
      %v736 = vmul.f32 %v732, 2.0
      %v737 = vsub.f32 1.5707964, %v733
      %v738 = vsub.f32 1.5707964, %v734
      %v739 = vsub.f32 1.5707964, %v735
      %v740 = vsub.f32 1.5707964, %v736
      %v741 = vsel %vm601, %v737, %v729
      %v742 = vsel %vm602, %v738, %v730
      %v743 = vsel %vm603, %v739, %v731
      %v744 = vsel %vm604, %v740, %v732
      %v745 = vmul.f32 %v593, %v741
      %v746 = vmul.f32 %v594, %v742
      %v747 = vmul.f32 %v595, %v743
      %v748 = vmul.f32 %v596, %v744
      %vm749 = vcmp.eq.f32.partialorder %v205, 6.0
      %v750 = vmul.f32 %v206, %v745
      %v751 = vmul.f32 %v206, %v746
      %v752 = vmul.f32 %v206, %v747
      %v753 = vmul.f32 %v206, %v748
      %v754 = vsel %vm749, 1, 0
      %v755 = vperm.slane %v754, 7
      %vm756 = vcmp.eq.s32.totalorder %v755, 1
      %v757 = vsel %vm756, %v750, 0.0
      %v758 = vsel %vm756, %v751, 0.0
      %v759 = vsel %vm756, %v752, 0.0
      %v760 = vsel %vm756, %v753, 0.0
      %v761 = vadd.f32 %v577, %v757
      %v762 = vadd.f32 %v578, %v758
      %v763 = vadd.f32 %v579, %v759
      %v764 = vadd.f32 %v580, %v760
      %vm765 = vcmp.eq.f32.partialorder %v205, 7.0
      %v766 = vsub.f32 1.5707964, %v745
      %v767 = vsub.f32 1.5707964, %v746
      %v768 = vsub.f32 1.5707964, %v747
      %v769 = vsub.f32 1.5707964, %v748
      %v770 = vmul.f32 %v206, %v766
      %v771 = vmul.f32 %v206, %v767
      %v772 = vmul.f32 %v206, %v768
      %v773 = vmul.f32 %v206, %v769
      %v774 = vsel %vm765, 1, 0
      %v775 = vperm.slane %v774, 7
      %vm776 = vcmp.eq.s32.totalorder %v775, 1
      %v777 = vsel %vm776, %v770, 0.0
      %v778 = vsel %vm776, %v771, 0.0
      %v779 = vsel %vm776, %v772, 0.0
      %v780 = vsel %vm776, %v773, 0.0
      %v781 = vadd.f32 %v761, %v777
      %v782 = vadd.f32 %v762, %v778
      %v783 = vadd.f32 %v763, %v779
      %v784 = vadd.f32 %v764, %v780
      %vm785 = vcmp.eq.f32.partialorder %v205, 8.0
      %vm786 = vcmp.lt.f32.partialorder %v233, 0.0
      %vm787 = vcmp.lt.f32.partialorder %v234, 0.0
      %vm788 = vcmp.lt.f32.partialorder %v235, 0.0
      %vm789 = vcmp.lt.f32.partialorder %v236, 0.0
      %v790 = vsel %vm786, -1.0, 1.0
      %v791 = vsel %vm787, -1.0, 1.0
      %v792 = vsel %vm788, -1.0, 1.0
      %v793 = vsel %vm789, -1.0, 1.0
      %v794 = vand.u32 2147483647, %v233
      %v795 = vand.u32 2147483647, %v234
      %v796 = vand.u32 2147483647, %v235
      %v797 = vand.u32 2147483647, %v236
      %vm798 = vcmp.gt.f32.partialorder %v794, 1.0
      %vm799 = vcmp.gt.f32.partialorder %v795, 1.0
      %vm800 = vcmp.gt.f32.partialorder %v796, 1.0
      %vm801 = vcmp.gt.f32.partialorder %v797, 1.0
      %v802 = vmax.f32 %v794, 1e-30
      %v803 = vmax.f32 %v795, 1e-30
      %v804 = vmax.f32 %v796, 1e-30
      %v805 = vmax.f32 %v797, 1e-30
      %v806 = vrcp.pop %v802
      %v807 = vrcp.pop %v803
      %v808 = vrcp.pop %v804
      %v809 = vrcp.pop %v805
      %v810 = vmul.f32 %v802, %v806
      %v811 = vmul.f32 %v803, %v807
      %v812 = vmul.f32 %v804, %v808
      %v813 = vmul.f32 %v805, %v809
      %v814 = vsub.f32 2.0, %v810
      %v815 = vsub.f32 2.0, %v811
      %v816 = vsub.f32 2.0, %v812
      %v817 = vsub.f32 2.0, %v813
      %v818 = vmul.f32 %v806, %v814
      %v819 = vmul.f32 %v807, %v815
      %v820 = vmul.f32 %v808, %v816
      %v821 = vmul.f32 %v809, %v817
      %vm822 = vcmp.eq.f32.partialorder %v802, 0.0
      %vm823 = vcmp.eq.f32.partialorder %v803, 0.0
      %vm824 = vcmp.eq.f32.partialorder %v804, 0.0
      %vm825 = vcmp.eq.f32.partialorder %v805, 0.0
      %v826 = vsel %vm822, %v806, %v818
      %v827 = vsel %vm823, %v807, %v819
      %v828 = vsel %vm824, %v808, %v820
      %v829 = vsel %vm825, %v809, %v821
      %v830 = vsel %vm798, %v826, %v794
      %v831 = vsel %vm799, %v827, %v795
      %v832 = vsel %vm800, %v828, %v796
      %v833 = vsel %vm801, %v829, %v797
      %vm834 = vcmp.gt.f32.partialorder %v830, 0.41421357
      %vm835 = vcmp.gt.f32.partialorder %v831, 0.41421357
      %vm836 = vcmp.gt.f32.partialorder %v832, 0.41421357
      %vm837 = vcmp.gt.f32.partialorder %v833, 0.41421357
      %v838 = vsub.f32 %v830, 1.0
      %v839 = vsub.f32 %v831, 1.0
      %v840 = vsub.f32 %v832, 1.0
      %v841 = vsub.f32 %v833, 1.0
      %v842 = vadd.f32 %v830, 1.0
      %v843 = vadd.f32 %v831, 1.0
      %v844 = vadd.f32 %v832, 1.0
      %v845 = vadd.f32 %v833, 1.0
      %v846 = vrcp.pop %v842
      %v847 = vrcp.pop %v843
      %v848 = vrcp.pop %v844
      %v849 = vrcp.pop %v845
      %v850 = vmul.f32 %v842, %v846
      %v851 = vmul.f32 %v843, %v847
      %v852 = vmul.f32 %v844, %v848
      %v853 = vmul.f32 %v845, %v849
      %v854 = vsub.f32 2.0, %v850
      %v855 = vsub.f32 2.0, %v851
      %v856 = vsub.f32 2.0, %v852
      %v857 = vsub.f32 2.0, %v853
      %v858 = vmul.f32 %v846, %v854
      %v859 = vmul.f32 %v847, %v855
      %v860 = vmul.f32 %v848, %v856
      %v861 = vmul.f32 %v849, %v857
      %vm862 = vcmp.eq.f32.partialorder %v842, 0.0
      %vm863 = vcmp.eq.f32.partialorder %v843, 0.0
      %vm864 = vcmp.eq.f32.partialorder %v844, 0.0
      %vm865 = vcmp.eq.f32.partialorder %v845, 0.0
      %v866 = vsel %vm862, %v846, %v858
      %v867 = vsel %vm863, %v847, %v859
      %v868 = vsel %vm864, %v848, %v860
      %v869 = vsel %vm865, %v849, %v861
      %v870 = vmul.f32 %v838, %v866
      %v871 = vmul.f32 %v839, %v867
      %v872 = vmul.f32 %v840, %v868
      %v873 = vmul.f32 %v841, %v869
      %v874 = vsel %vm834, %v870, %v830
      %v875 = vsel %vm835, %v871, %v831
      %v876 = vsel %vm836, %v872, %v832
      %v877 = vsel %vm837, %v873, %v833
      %v878 = vmul.f32 %v874, %v874
      %v879 = vmul.f32 %v875, %v875
      %v880 = vmul.f32 %v876, %v876
      %v881 = vmul.f32 %v877, %v877
      %v882 = vmul.f32 %v878, %v878
      %v883 = vmul.f32 %v879, %v879
      %v884 = vmul.f32 %v880, %v880
      %v885 = vmul.f32 %v881, %v881
      %v886 = vmul.f32 %v882, %v882
      %v887 = vmul.f32 %v883, %v883
      %v888 = vmul.f32 %v884, %v884
      %v889 = vmul.f32 %v885, %v885
      %v890 = vmul.f32 %v878, -0.33333334
      %v891 = vmul.f32 %v879, -0.33333334
      %v892 = vmul.f32 %v880, -0.33333334
      %v893 = vmul.f32 %v881, -0.33333334
      %v894 = vadd.f32 %v890, 1.0
      %v895 = vadd.f32 %v891, 1.0
      %v896 = vadd.f32 %v892, 1.0
      %v897 = vadd.f32 %v893, 1.0
      %v898 = vmul.f32 %v878, -0.14285715
      %v899 = vmul.f32 %v879, -0.14285715
      %v900 = vmul.f32 %v880, -0.14285715
      %v901 = vmul.f32 %v881, -0.14285715
      %v902 = vadd.f32 %v898, 0.2
      %v903 = vadd.f32 %v899, 0.2
      %v904 = vadd.f32 %v900, 0.2
      %v905 = vadd.f32 %v901, 0.2
      %v906 = vmul.f32 %v902, %v882
      %v907 = vmul.f32 %v903, %v883
      %v908 = vmul.f32 %v904, %v884
      %v909 = vmul.f32 %v905, %v885
      %v910 = vadd.f32 %v894, %v906
      %v911 = vadd.f32 %v895, %v907
      %v912 = vadd.f32 %v896, %v908
      %v913 = vadd.f32 %v897, %v909
      %v914 = vmul.f32 %v878, -0.09090909
      %v915 = vmul.f32 %v879, -0.09090909
      %v916 = vmul.f32 %v880, -0.09090909
      %v917 = vmul.f32 %v881, -0.09090909
      %v918 = vadd.f32 %v914, 0.11111111
      %v919 = vadd.f32 %v915, 0.11111111
      %v920 = vadd.f32 %v916, 0.11111111
      %v921 = vadd.f32 %v917, 0.11111111
      %v922 = vmul.f32 %v882, 0.07692308
      %v923 = vmul.f32 %v883, 0.07692308
      %v924 = vmul.f32 %v884, 0.07692308
      %v925 = vmul.f32 %v885, 0.07692308
      %v926 = vadd.f32 %v918, %v922
      %v927 = vadd.f32 %v919, %v923
      %v928 = vadd.f32 %v920, %v924
      %v929 = vadd.f32 %v921, %v925
      %v930 = vmul.f32 %v926, %v886
      %v931 = vmul.f32 %v927, %v887
      %v932 = vmul.f32 %v928, %v888
      %v933 = vmul.f32 %v929, %v889
      %v934 = vadd.f32 %v910, %v930
      %v935 = vadd.f32 %v911, %v931
      %v936 = vadd.f32 %v912, %v932
      %v937 = vadd.f32 %v913, %v933
      %v938 = vmul.f32 %v874, %v934
      %v939 = vmul.f32 %v875, %v935
      %v940 = vmul.f32 %v876, %v936
      %v941 = vmul.f32 %v877, %v937
      %v942 = vadd.f32 %v938, 0.7853982
      %v943 = vadd.f32 %v939, 0.7853982
      %v944 = vadd.f32 %v940, 0.7853982
      %v945 = vadd.f32 %v941, 0.7853982
      %v946 = vsel %vm834, %v942, %v938
      %v947 = vsel %vm835, %v943, %v939
      %v948 = vsel %vm836, %v944, %v940
      %v949 = vsel %vm837, %v945, %v941
      %v950 = vsub.f32 1.5707964, %v946
      %v951 = vsub.f32 1.5707964, %v947
      %v952 = vsub.f32 1.5707964, %v948
      %v953 = vsub.f32 1.5707964, %v949
      %v954 = vsel %vm798, %v950, %v946
      %v955 = vsel %vm799, %v951, %v947
      %v956 = vsel %vm800, %v952, %v948
      %v957 = vsel %vm801, %v953, %v949
      %v958 = vmul.f32 %v790, %v954
      %v959 = vmul.f32 %v791, %v955
      %v960 = vmul.f32 %v792, %v956
      %v961 = vmul.f32 %v793, %v957
      %v962 = vmul.f32 %v206, %v958
      %v963 = vmul.f32 %v206, %v959
      %v964 = vmul.f32 %v206, %v960
      %v965 = vmul.f32 %v206, %v961
      %v966 = vsel %vm785, 1, 0
      %v967 = vperm.slane %v966, 7
      %vm968 = vcmp.eq.s32.totalorder %v967, 1
      %v969 = vsel %vm968, %v962, 0.0
      %v970 = vsel %vm968, %v963, 0.0
      %v971 = vsel %vm968, %v964, 0.0
      %v972 = vsel %vm968, %v965, 0.0
      %v973 = vadd.f32 %v781, %v969
      %v974 = vadd.f32 %v782, %v970
      %v975 = vadd.f32 %v783, %v971
      %v976 = vadd.f32 %v784, %v972
      %vm977 = vcmp.eq.f32.partialorder %v205, 9.0
      %v978 = vmin.f32 %v233, 10.0
      %v979 = vmin.f32 %v234, 10.0
      %v980 = vmin.f32 %v235, 10.0
      %v981 = vmin.f32 %v236, 10.0
      %v982 = vmul.f32 %v978, 1.442695
      %v983 = vpow.pop %v982
      %v984 = vmul.f32 %v979, 1.442695
      %v985 = vpow.pop %v984
      %v986 = vmul.f32 %v980, 1.442695
      %v987 = vpow.pop %v986
      %v988 = vmul.f32 %v981, 1.442695
      %v989 = vpow.pop %v988
      %v990 = vmul.f32 %v206, %v983
      %v991 = vmul.f32 %v206, %v985
      %v992 = vmul.f32 %v206, %v987
      %v993 = vmul.f32 %v206, %v989
      %v994 = vsel %vm977, 1, 0
      %v995 = vperm.slane %v994, 7
      %vm996 = vcmp.eq.s32.totalorder %v995, 1
      %v997 = vsel %vm996, %v990, 0.0
      %v998 = vsel %vm996, %v991, 0.0
      %v999 = vsel %vm996, %v992, 0.0
      %v1000 = vsel %vm996, %v993, 0.0
      %v1001 = vadd.f32 %v973, %v997
      %v1002 = vadd.f32 %v974, %v998
      %v1003 = vadd.f32 %v975, %v999
      %v1004 = vadd.f32 %v976, %v1000
      %vm1005 = vcmp.eq.f32.partialorder %v205, 10.0
      %v1006 = vmax.f32 %v233, 0.001
      %v1007 = vmax.f32 %v234, 0.001
      %v1008 = vmax.f32 %v235, 0.001
      %v1009 = vmax.f32 %v236, 0.001
      %v1010 = vlog2.pop %v1006
      %v1011 = vmul.f32 %v1010, 0.6931472
      %v1012 = vlog2.pop %v1007
      %v1013 = vmul.f32 %v1012, 0.6931472
      %v1014 = vlog2.pop %v1008
      %v1015 = vmul.f32 %v1014, 0.6931472
      %v1016 = vlog2.pop %v1009
      %v1017 = vmul.f32 %v1016, 0.6931472
      %v1018 = vmul.f32 %v206, %v1011
      %v1019 = vmul.f32 %v206, %v1013
      %v1020 = vmul.f32 %v206, %v1015
      %v1021 = vmul.f32 %v206, %v1017
      %v1022 = vsel %vm1005, 1, 0
      %v1023 = vperm.slane %v1022, 7
      %vm1024 = vcmp.eq.s32.totalorder %v1023, 1
      %v1025 = vsel %vm1024, %v1018, 0.0
      %v1026 = vsel %vm1024, %v1019, 0.0
      %v1027 = vsel %vm1024, %v1020, 0.0
      %v1028 = vsel %vm1024, %v1021, 0.0
      %v1029 = vadd.f32 %v1001, %v1025
      %v1030 = vadd.f32 %v1002, %v1026
      %v1031 = vadd.f32 %v1003, %v1027
      %v1032 = vadd.f32 %v1004, %v1028
      %v1033 = vmul.f32 %v206, %v210
      %v1034 = vmul.f32 %v206, %v215
      %v1035 = vmul.f32 %v206, %v220
      %v1036 = vmul.f32 %v206, %v225
      %v1037 = vadd.f32 %v1033, %v227
      %v1038 = vadd.f32 %v1034, %v227
      %v1039 = vadd.f32 %v1035, %v227
      %v1040 = vadd.f32 %v1036, %v227
      %v1041 = vmul.f32 %v1037, %v210
      %v1042 = vmul.f32 %v1038, %v215
      %v1043 = vmul.f32 %v1039, %v220
      %v1044 = vmul.f32 %v1040, %v225
      %vm1045 = vcmp.eq.f32.partialorder %v205, 11.0
      %v1046 = vsel %vm1045, 1, 0
      %v1047 = vperm.slane %v1046, 7
      %vm1048 = vcmp.eq.s32.totalorder %v1047, 1
      %v1049 = vsel %vm1048, %v1037, 0.0
      %v1050 = vsel %vm1048, %v1038, 0.0
      %v1051 = vsel %vm1048, %v1039, 0.0
      %v1052 = vsel %vm1048, %v1040, 0.0
      %v1053 = vadd.f32 %v1029, %v1049
      %v1054 = vadd.f32 %v1030, %v1050
      %v1055 = vadd.f32 %v1031, %v1051
      %v1056 = vadd.f32 %v1032, %v1052
      %vm1057 = vcmp.eq.f32.partialorder %v205, 12.0
      %v1058 = vadd.f32 %v1041, %v232
      %v1059 = vadd.f32 %v1042, %v232
      %v1060 = vadd.f32 %v1043, %v232
      %v1061 = vadd.f32 %v1044, %v232
      %v1062 = vsel %vm1057, 1, 0
      %v1063 = vperm.slane %v1062, 7
      %vm1064 = vcmp.eq.s32.totalorder %v1063, 1
      %v1065 = vsel %vm1064, %v1058, 0.0
      %v1066 = vsel %vm1064, %v1059, 0.0
      %v1067 = vsel %vm1064, %v1060, 0.0
      %v1068 = vsel %vm1064, %v1061, 0.0
      %v1069 = vadd.f32 %v1053, %v1065
      %v1070 = vadd.f32 %v1054, %v1066
      %v1071 = vadd.f32 %v1055, %v1067
      %v1072 = vadd.f32 %v1056, %v1068
      %vm1073 = vcmp.eq.f32.partialorder %v205, 13.0
      %v1074 = vmul.f32 %v1041, %v210
      %v1075 = vmul.f32 %v1042, %v215
      %v1076 = vmul.f32 %v1043, %v220
      %v1077 = vmul.f32 %v1044, %v225
      %v1078 = vadd.f32 %v1074, %v232
      %v1079 = vadd.f32 %v1075, %v232
      %v1080 = vadd.f32 %v1076, %v232
      %v1081 = vadd.f32 %v1077, %v232
      %v1082 = vsel %vm1073, 1, 0
      %v1083 = vperm.slane %v1082, 7
      %vm1084 = vcmp.eq.s32.totalorder %v1083, 1
      %v1085 = vsel %vm1084, %v1078, 0.0
      %v1086 = vsel %vm1084, %v1079, 0.0
      %v1087 = vsel %vm1084, %v1080, 0.0
      %v1088 = vsel %vm1084, %v1081, 0.0
      %v1089 = vadd.f32 %v1069, %v1085
      %v1090 = vadd.f32 %v1070, %v1086
      %v1091 = vadd.f32 %v1071, %v1087
      %v1092 = vadd.f32 %v1072, %v1088
      %v1094 = vrot.slane %v205, 1
      %v1096 = vmax.f32 %v205, %v1094
      %v1097 = vrot.slane %v205, 2
      %v1099 = vmax.f32 %v1096, %v1097
      %v1100 = vperm.slane %v1099, 4
      %v1101 = vsub.f32 %v205, %v1100
      %v1102 = vmul.f32 %v1101, 1.442695
      %v1103 = vpow.pop %v1102
      %v1105 = vrot.slane %v1103, 1
      %v1107 = vadd.f32 %v1103, %v1105
      %v1108 = vrot.slane %v1103, 2
      %v1110 = vadd.f32 %v1107, %v1108
      %v1111 = vrcp.pop %v1110
      %v1112 = vmul.f32 %v1110, %v1111
      %v1113 = vsub.f32 2.0, %v1112
      %v1114 = vmul.f32 %v1111, %v1113
      %vm1115 = vcmp.eq.f32.partialorder %v1110, 0.0
      %v1116 = vsel %vm1115, %v1111, %v1114
      %v1117 = vsub.f32 %v1103, %v1105
      %v1118 = vmul.f32 %v1117, %v1116
      %v1119 = vrot.slane %v205, 7
      %v1121 = vmul.f32 %v1118, %v1119
      %v1123 = vrot.slane %v1116, 6
      %v1125 = vmul.f32 %v1103, %v1123
      %1126 = vrot.lane.b32.xlu0 %v1089, 127
      %v1127 = vpop.permute.xlu0 %1126
      %1128 = vrot.lane.b32.xlu0 %v1090, 127
      %v1129 = vpop.permute.xlu0 %1128
      %1130 = vrot.lane.b32.xlu0 %v1091, 127
      %v1131 = vpop.permute.xlu0 %1130
      %1132 = vrot.lane.b32.xlu0 %v1092, 127
      %v1133 = vpop.permute.xlu0 %1132
      %v1134 = vperm.slane %v1121, 4
      %v1135 = vmul.f32 %v1134, %v1089
      %v1136 = vmul.f32 %v1134, %v1090
      %v1137 = vmul.f32 %v1134, %v1091
      %v1138 = vmul.f32 %v1134, %v1092
      %v1139 = vperm.slane %v1125, 6
      %v1140 = vmul.f32 %v1139, %v1127
      %v1141 = vmul.f32 %v1139, %v1129
      %v1142 = vmul.f32 %v1139, %v1131
      %v1143 = vmul.f32 %v1139, %v1133
      %v1144 = vadd.f32 %v1135, %v1140
      %v1145 = vadd.f32 %v1136, %v1141
      %v1146 = vadd.f32 %v1137, %v1142
      %v1147 = vadd.f32 %v1138, %v1143
      %1148 = vadd.xlane.f32.xlu0 %v1144
      %v1149 = vpop.xlane.xlu0 %1148
      %1150 = vadd.xlane.f32.xlu0 %v1145
      %v1151 = vpop.xlane.xlu0 %1150
      %1152 = vadd.xlane.f32.xlu0 %v1146
      %v1153 = vpop.xlane.xlu0 %1152
      %1154 = vadd.xlane.f32.xlu0 %v1147
      %v1155 = vpop.xlane.xlu0 %1154
      %v1156 = vsub.f32 %v1149, %v175
      %v1157 = vsub.f32 %v1151, %v176
      %v1158 = vsub.f32 %v1153, %v177
      %v1159 = vsub.f32 %v1155, %v178
      %v1160 = vand.u32 2147483647, %v1156
      %v1161 = vand.u32 2147483647, %v1157
      %v1162 = vand.u32 2147483647, %v1158
      %v1163 = vand.u32 2147483647, %v1159
      %vm1164 = vcmp.lt.f32.partialorder %v1160, 1.0
      %vm1165 = vcmp.lt.f32.partialorder %v1161, 1.0
      %vm1166 = vcmp.lt.f32.partialorder %v1162, 1.0
      %vm1167 = vcmp.lt.f32.partialorder %v1163, 1.0
      %v1168 = vmul.f32 %v1156, 0.5
      %v1169 = vmul.f32 %v1157, 0.5
      %v1170 = vmul.f32 %v1158, 0.5
      %v1171 = vmul.f32 %v1159, 0.5
      %v1172 = vmul.f32 %v1168, %v1156
      %v1173 = vmul.f32 %v1169, %v1157
      %v1174 = vmul.f32 %v1170, %v1158
      %v1175 = vmul.f32 %v1171, %v1159
      %v1176 = vsub.f32 %v1160, 0.5
      %v1177 = vsub.f32 %v1161, 0.5
      %v1178 = vsub.f32 %v1162, 0.5
      %v1179 = vsub.f32 %v1163, 0.5
      %v1180 = vsel %vm1164, %v1172, %v1176
      %v1181 = vsel %vm1165, %v1173, %v1177
      %v1182 = vsel %vm1166, %v1174, %v1178
      %v1183 = vsel %vm1167, %v1175, %v1179
      %vm1184 = vcmask 7168
      %1185 = vst.msk [vmem:[%s172] sm:$0xff] %vm1184, %v1149
      %1186 = vst.msk [vmem:[%s172 + $0x8] sm:$0xff] %vm1184, %v1151
      %1187 = vst.msk [vmem:[%s172 + $0x10] sm:$0xff] %vm1184, %v1153
      %1188 = vst.msk [vmem:[%s172 + $0x18] sm:$0xff] %vm1184, %v1155
      %vm1189 = vcmask 15368
      %1190 = vst.msk [vmem:[%s172] sm:$0xff] %vm1189, %v1180
      %1191 = vst.msk [vmem:[%s172 + $0x8] sm:$0xff] %vm1189, %v1181
      %1192 = vst.msk [vmem:[%s172 + $0x10] sm:$0xff] %vm1189, %v1182
      %1193 = vst.msk [vmem:[%s172 + $0x18] sm:$0xff] %vm1189, %v1183
      %s1194 = smul.u32 4, %s14
      %p1195 = scmp.lt.s32.totalorder %s1194, 15
      %s1196 = scalar_select %p1195, %s1194, 15
      %s1197 = smul.addr %s1196, 8
      %s1198 = scalar_lea.vmem %s3, %s1197
      // Predicated region
      $region33: #{_forward_impl.1} parent=31 // pred_check
        %p1199 = pneg %p100
      $region34: #{_forward_impl.1} parent=31 // pred_check_branch
        %1201 = sbr.rel (%p1199) target = $region36
      $region35: #{_forward_impl.1} parent=31 // pred_region
        %s1202 = smul.u32 4, %s14
      $region36: #{_forward_impl.1} parent=31 // pred_fallthru
        _
    $region32: #{_forward_impl.1} parent=5 // pred_fallthru
      _
    %p1203 = scmp.le.s32.totalorder 2, %s9
    // Predicated region
    $region37: #{_forward_impl.1} parent=5 // pred_check
      %p1204 = pneg %p1203
    $region38: #{_forward_impl.1} parent=5 // pred_check_branch
      %1206 = sbr.rel (%p1204) target = $region40
    $region39: #{_forward_impl.1} parent=5 // pred_region
      %s1207 = ssub.s32 %s9, 2
      // Predicated region
      $region41: #{_forward_impl.1} parent=39 // pred_check
        %p1208 = pneg %p106
      $region42: #{_forward_impl.1} parent=39 // pred_check_branch
        %1210 = sbr.rel (%p1208) target = $region44
      $region43: #{_forward_impl.1} parent=39 // pred_region
        %s1211 = smul.u32 4, %s15
        %p1212 = scmp.lt.s32.totalorder %s1211, 15
        %s1213 = scalar_select %p1212, %s1211, 15
        %s1214 = smul.addr %s1213, 8
        %s1215 = scalar_lea.vmem %s3, %s1214
      $region44: #{_forward_impl.1} parent=39 // pred_fallthru
        _
    $region40: #{_forward_impl.1} parent=5 // pred_fallthru
      _
  $region6: #{_forward_impl.1} parent=0 // loop_footer
    %s13 = sadd.s32 1, %s9
  $region7: #{_forward_impl.1} parent=0 // loop_footer_branch
    %8 = sbr.rel target = $region3
  $region8: #{_forward_impl.1} parent=0 // loop_exit
    _

</llo_original>
